<compile_context>
chip_gen: v7x
topology: tpu7x:2x2x1
jax: 0.10.0
libtpu: 0.0.40
codegen_flags: <defaults>
</compile_context>

<pallas_src>
import functools

import jax
import jax.numpy as jnp
from jax.experimental import pallas as pl
from jax.experimental.pallas import tpu as pltpu


def _encoder_layer_kernel(
    x_ref, wqkv_ref, bqkv_ref, wo_ref, w1_ref, b1_ref, w2_ref, vecs_ref,
    out_ref, ctx_ref, *, num_heads, head_dim, block_batch, compute_dtype,
):
    eps = 1e-5
    E = num_heads * head_dim
    S = x_ref.shape[1]
    TB = block_batch
    R = TB * S
    cd = compute_dtype

    def layer_norm(t, gamma, beta):
        # one pass: var = E[x^2] - mu^2, clamped at 0 against cancellation.
        mu = jnp.mean(t, axis=-1, keepdims=True)
        ex2 = jnp.mean(t * t, axis=-1, keepdims=True)
        var = jnp.maximum(ex2 - mu * mu, 0.0)
        return (t - mu) * jax.lax.rsqrt(var + eps) * gamma + beta

    x = x_ref[...].reshape(R, E)                              # (TB*S, E) f32

    # --- fused QKV projection: one (R,E)@(E,3E) MXU matmul (scale pre-folded into Wq) ---
    qkv = jnp.dot(x.astype(cd), wqkv_ref[...],
                  preferred_element_type=jnp.float32) + bqkv_ref[...]   # (R, 3E) f32

    # --- attention per (batch element, head); contexts gathered into ctx_ref ---
    for b in range(TB):
        r0 = b * S
        for h in range(num_heads):
            lo = h * head_dim
            qh = qkv[r0:r0 + S, lo:lo + head_dim].astype(cd)
            kh = qkv[r0:r0 + S, E + lo:E + lo + head_dim].astype(cd)
            vh = qkv[r0:r0 + S, 2 * E + lo:2 * E + lo + head_dim].astype(cd)
            # q @ k^T via dot_general contracting the last dims (no XLU transpose)
            scores = jax.lax.dot_general(
                qh, kh, (((1,), (1,)), ((), ())),
                preferred_element_type=jnp.float32)           # (S, S)
            scores = scores - jnp.max(scores, axis=-1, keepdims=True)
            p = jnp.exp(scores)
            # EUP approximate reciprocal instead of a VPU divide
            p = p * pl.reciprocal(jnp.sum(p, axis=-1, keepdims=True), approx=True)
            ctx = jnp.dot(p.astype(cd), vh, preferred_element_type=jnp.float32)
            ctx_ref[r0:r0 + S, lo:lo + head_dim] = ctx.astype(ctx_ref.dtype)

    # --- single full-E output projection (K = E contraction fills the MXU) ---
    attn = jnp.dot(ctx_ref[...], wo_ref[...], preferred_element_type=jnp.float32)

    vecs = vecs_ref[...]
    b_o, b_2 = vecs[0:1, :], vecs[1:2, :]
    g1, be1 = vecs[2:3, :], vecs[3:4, :]
    g2, be2 = vecs[4:5, :], vecs[5:6, :]

    # --- residual + LayerNorm 1 (dropout = identity, eval semantics) ---
    x1 = layer_norm(x + attn + b_o, g1, be1)

    # --- FFN: Linear -> ReLU -> Linear ---
    h1 = jnp.maximum(
        jnp.dot(x1.astype(cd), w1_ref[...], preferred_element_type=jnp.float32)
        + b1_ref[...], 0.0)
    ffn = jnp.dot(h1.astype(cd), w2_ref[...], preferred_element_type=jnp.float32) + b_2

    # --- residual + LayerNorm 2 ---
    out_ref[...] = layer_norm(x1 + ffn, g2, be2).reshape(TB, S, E).astype(out_ref.dtype)


def _full_spec(shape):
    ndim = len(shape)

    def index_map(b):
        return (0,) * ndim

    return pl.BlockSpec(shape, index_map)


def _pick_block_batch(batch, seq, target_rows=256):
    # Largest divisor of `batch` such that TB*seq ~<= target_rows while keeping
    # >= 2 grid steps when batch allows (feeds both v7x TensorCores).
    cap = batch if batch == 1 else batch // 2
    want = max(1, target_rows // max(seq, 1))
    limit = max(1, min(cap, want))
    tb = 1
    for d in range(1, limit + 1):
        if batch % d == 0:
            tb = d
    return tb


def transformer_encoder_layer(x, params, *, num_heads, compute_dtype=jnp.float32,
                              block_batch=None):
    """x: (B, S, E) float32. params: dict of pre-transposed (in, out) weights/biases."""
    B, S, E = x.shape
    F = params["w1"].shape[1]
    assert E % num_heads == 0
    head_dim = E // num_heads
    scale = 1.0 / (head_dim ** 0.5)
    cd = compute_dtype

    TB = block_batch if block_batch is not None else _pick_block_batch(B, S)
    assert B % TB == 0, "block_batch must divide batch"

    # Host-side packing (free under jit):
    #  * 1/sqrt(head_dim) folded into the Q columns (weight and bias),
    #  * matmul weights pre-cast to compute_dtype (halves DMA/VMEM for bf16,
    #    removes per-grid-step casts inside the kernel),
    #  * all small per-feature vectors packed into one (6, E) f32 slab.
    w_qkv = jnp.concatenate(
        [params["wq"] * scale, params["wk"], params["wv"]], axis=1).astype(cd)   # (E, 3E)
    b_qkv = jnp.concatenate(
        [params["bq"] * scale, params["bk"], params["bv"]], axis=1)              # (1, 3E) f32
    wo = params["wo"].astype(cd)                                                 # (E, E)
    w1 = params["w1"].astype(cd)                                                 # (E, F)
    w2 = params["w2"].astype(cd)                                                 # (F, E)
    vecs = jnp.concatenate([params["bo"], params["b2"], params["gamma1"],
                            params["beta1"], params["gamma2"], params["beta2"]],
                           axis=0)                                               # (6, E) f32

    args = (x, w_qkv, b_qkv, wo, w1, params["b1"], w2, vecs)

    kernel = functools.partial(_encoder_layer_kernel, num_heads=num_heads,
                               head_dim=head_dim, block_batch=TB, compute_dtype=cd)

    flops = (2 * B * S * E * 3 * E                       # fused QKV
             + 4 * B * num_heads * S * S * head_dim      # scores + context
             + 2 * B * S * E * E                         # output projection
             + 4 * B * S * E * F)                        # FFN
    wbytes = sum(int(a.size) * a.dtype.itemsize for a in args[1:])
    bytes_accessed = 2 * int(x.size) * x.dtype.itemsize + wbytes
    cost = pl.CostEstimate(flops=int(flops),
                           transcendentals=int(B * num_heads * S * S),
                           bytes_accessed=int(bytes_accessed))

    # VMEM limit: generous on v5e/v6e (128 MiB physical), conservative on v7x (64 MiB).
    info = None
    try:
        info = pltpu.get_tpu_info()
    except Exception:  # hardware-query only; kernel errors are NOT caught here
        info = None
    vmem_cap = getattr(info, "vmem_capacity_bytes", None) or (64 << 20)
    vmem_limit = min(int(vmem_cap * 0.85), 112 << 20)

    in_specs = [pl.BlockSpec((TB, S, E), lambda b: (b, 0, 0))]
    # Weight index_maps are constant -> the pipeline keeps the resident block
    # after step 0 (no re-DMA per grid step).
    in_specs += [_full_spec(a.shape) for a in args[1:]]

    return pl.pallas_call(
        kernel,
        out_shape=jax.ShapeDtypeStruct((B, S, E), x.dtype),
        grid_spec=pltpu.PrefetchScalarGridSpec(
            num_scalar_prefetch=0,
            grid=(B // TB,),
            in_specs=in_specs,
            out_specs=pl.BlockSpec((TB, S, E), lambda b: (b, 0, 0)),
            scratch_shapes=[pltpu.VMEM((TB * S, E), cd)],   # per-head ctx gather buffer
        ),
        compiler_params=pltpu.CompilerParams(
            dimension_semantics=("parallel",),   # batch-block steps feed both v7x TCs
            vmem_limit_bytes=int(vmem_limit),
        ),
        cost_estimate=cost,
    )(*args)


def _reference(x, params, *, num_heads):
    """Pure-JAX reference matching the PyTorch forward (dropout = identity)."""
    B, S, E = x.shape
    Dh = E // num_heads

    def linear(t, w, b):
        return t @ w + b

    q = linear(x, params["wq"], params["bq"]).reshape(B, S, num_heads, Dh).transpose(0, 2, 1, 3)
    k = linear(x, params["wk"], params["bk"]).reshape(B, S, num_heads, Dh).transpose(0, 2, 1, 3)
    v = linear(x, params["wv"], params["bv"]).reshape(B, S, num_heads, Dh).transpose(0, 2, 1, 3)
    scores = jnp.einsum("bhqd,bhkd->bhqk", q, k) / (Dh ** 0.5)
    attn = jax.nn.softmax(scores, axis=-1)
    ctx = jnp.einsum("bhqk,bhkd->bhqd", attn, v).transpose(0, 2, 1, 3).reshape(B, S, E)
    attn_out = linear(ctx, params["wo"], params["bo"])

    def layer_norm(t, g, b):
        mu = jnp.mean(t, axis=-1, keepdims=True)
        var = jnp.mean((t - mu) ** 2, axis=-1, keepdims=True)
        return (t - mu) * jax.lax.rsqrt(var + 1e-5) * g + b

    x1 = layer_norm(x + attn_out, params["gamma1"], params["beta1"])
    h = jnp.maximum(linear(x1, params["w1"], params["b1"]), 0.0)
    ffn_out = linear(h, params["w2"], params["b2"])
    return layer_norm(x1 + ffn_out, params["gamma2"], params["beta2"])


def _init_params(key, embed_dim, ff_dim):
    ks = jax.random.split(key, 12)

    def lin(kw, kb, fan_in, fan_out):
        bound = 1.0 / (fan_in ** 0.5)
        w = jax.random.uniform(kw, (fan_in, fan_out), jnp.float32, -bound, bound)
        b = jax.random.uniform(kb, (1, fan_out), jnp.float32, -bound, bound)
        return w, b

    wq, bq = lin(ks[0], ks[1], embed_dim, embed_dim)
    wk, bk = lin(ks[2], ks[3], embed_dim, embed_dim)
    wv, bv = lin(ks[4], ks[5], embed_dim, embed_dim)
    wo, bo = lin(ks[6], ks[7], embed_dim, embed_dim)
    w1, b1 = lin(ks[8], ks[9], embed_dim, ff_dim)
    w2, b2 = lin(ks[10], ks[11], ff_dim, embed_dim)
    return dict(
        wq=wq, bq=bq, wk=wk, bk=bk, wv=wv, bv=bv, wo=wo, bo=bo,
        w1=w1, b1=b1, w2=w2, b2=b2,
        gamma1=jnp.ones((1, embed_dim), jnp.float32),
        beta1=jnp.zeros((1, embed_dim), jnp.float32),
        gamma2=jnp.ones((1, embed_dim), jnp.float32),
        beta2=jnp.zeros((1, embed_dim), jnp.float32),
    )


if __name__ == "__main__":
    key = jax.random.PRNGKey(0)
    kx, kp, kx2 = jax.random.split(key, 3)

    # Config 1: B=2, S=8, E=32, H=4, F=64  (TB=1 -> two parallel grid steps).
    B, S, E, H, F = 2, 8, 32, 4, 64
    x = jax.random.normal(kx, (B, S, E), jnp.float32)
    params = _init_params(kp, E, F)
    ref = _reference(x, params, num_heads=H)

    # f32 matmul path (tolerance covers the approximate-reciprocal softmax norm).
    out = jax.block_until_ready(transformer_encoder_layer(x, params, num_heads=H))
    assert out.shape == (B, S, E)
    assert jnp.allclose(out, ref, atol=5e-3, rtol=5e-3), "f32 kernel mismatch vs reference"

    # bf16 matmul path (v6e/v7x MXU), f32 accumulation + f32 softmax/LayerNorm math.
    out_bf16 = jax.block_until_ready(
        transformer_encoder_layer(x, params, num_heads=H, compute_dtype=jnp.bfloat16))
    assert jnp.allclose(out_bf16, ref, atol=1e-1, rtol=1e-1), "bf16 kernel mismatch vs reference"

    # Config 2: B=4 exercises the multi-batch-per-grid-step (TB=2) path.
    x2 = jax.random.normal(kx2, (4, S, E), jnp.float32)
    ref2 = _reference(x2, params, num_heads=H)
    out2 = jax.block_until_ready(
        transformer_encoder_layer(x2, params, num_heads=H, block_batch=2))
    assert out2.shape == (4, S, E)
    assert jnp.allclose(out2, ref2, atol=5e-3, rtol=5e-3), "TB=2 kernel mismatch vs reference"

    print("KERNEL_OK")
</pallas_src>

<mosaic_0001>
module attributes {stable_mosaic.version = 11 : i64} {
  func.func @_encoder_layer_kernel(%arg0: i32, %arg1: memref<1x8x32xf32, #tpu.memory_space<vmem>>, %arg2: memref<32x96xf32, #tpu.memory_space<vmem>>, %arg3: memref<1x96xf32, #tpu.memory_space<vmem>>, %arg4: memref<32x32xf32, #tpu.memory_space<vmem>>, %arg5: memref<32x64xf32, #tpu.memory_space<vmem>>, %arg6: memref<1x64xf32, #tpu.memory_space<vmem>>, %arg7: memref<64x32xf32, #tpu.memory_space<vmem>>, %arg8: memref<6x32xf32, #tpu.memory_space<vmem>>, %arg9: memref<1x8x32xf32, #tpu.memory_space<vmem>>, %arg10: memref<8x32xf32, #tpu.memory_space<vmem>>) attributes {dimension_semantics = [#tpu.dimension_semantics<parallel>], iteration_bounds = array<i64: 2>, scalar_prefetch = 0 : i64, scratch_operands = 1 : i64, tpu.core_type = #tpu.core_type<tc>, window_params = [{transform_indices = @transform_0, window_bounds = array<i64: 1, 8, 32>}, {pipeline_mode = #tpu.pipeline_mode<synchronous>, transform_indices = @transform_1, window_bounds = array<i64: 32, 96>}, {pipeline_mode = #tpu.pipeline_mode<synchronous>, transform_indices = @transform_2, window_bounds = array<i64: 1, 96>}, {pipeline_mode = #tpu.pipeline_mode<synchronous>, transform_indices = @transform_3, window_bounds = array<i64: 32, 32>}, {pipeline_mode = #tpu.pipeline_mode<synchronous>, transform_indices = @transform_4, window_bounds = array<i64: 32, 64>}, {pipeline_mode = #tpu.pipeline_mode<synchronous>, transform_indices = @transform_5, window_bounds = array<i64: 1, 64>}, {pipeline_mode = #tpu.pipeline_mode<synchronous>, transform_indices = @transform_6, window_bounds = array<i64: 64, 32>}, {pipeline_mode = #tpu.pipeline_mode<synchronous>, transform_indices = @transform_7, window_bounds = array<i64: 6, 32>}, {transform_indices = @transform_8, window_bounds = array<i64: 1, 8, 32>}]} {
    %c0 = arith.constant 0 : index
    %c0_0 = arith.constant 0 : index
    %c0_1 = arith.constant 0 : index
    %0 = vector.load %arg1[%c0, %c0_0, %c0_1] : memref<1x8x32xf32, #tpu.memory_space<vmem>>, vector<1x8x32xf32>
    %1 = vector.shape_cast %0 : vector<1x8x32xf32> to vector<8x32xf32>
    %c0_2 = arith.constant 0 : index
    %c0_3 = arith.constant 0 : index
    %2 = vector.load %arg2[%c0_2, %c0_3] : memref<32x96xf32, #tpu.memory_space<vmem>>, vector<32x96xf32>
    %cst = arith.constant dense<0.000000e+00> : vector<8x96xf32>
    %3 = tpu.matmul %1, %2, %cst {dimension_numbers = #tpu.dot_dimension_numbers<[1], [0], [0], [1], [0, 0, 1, 1], [], []>} : vector<8x32xf32>, vector<32x96xf32>, vector<8x96xf32> -> vector<8x96xf32>
    %c0_4 = arith.constant 0 : index
    %c0_5 = arith.constant 0 : index
    %4 = vector.load %arg3[%c0_4, %c0_5] : memref<1x96xf32, #tpu.memory_space<vmem>>, vector<1x96xf32>
    %5 = vector.broadcast %4 : vector<1x96xf32> to vector<8x96xf32>
    %6 = arith.addf %3, %5 : vector<8x96xf32>
    %7 = vector.extract_strided_slice %6 {offsets = [0, 0], sizes = [8, 8], strides = [1, 1]} : vector<8x96xf32> to vector<8x8xf32>
    %8 = vector.extract_strided_slice %6 {offsets = [0, 32], sizes = [8, 8], strides = [1, 1]} : vector<8x96xf32> to vector<8x8xf32>
    %9 = vector.extract_strided_slice %6 {offsets = [0, 64], sizes = [8, 8], strides = [1, 1]} : vector<8x96xf32> to vector<8x8xf32>
    %cst_6 = arith.constant dense<0.000000e+00> : vector<8x8xf32>
    %10 = tpu.matmul %7, %8, %cst_6 {dimension_numbers = #tpu.dot_dimension_numbers<[1], [1], [0], [0], [0, 0, 1, 0], [], []>} : vector<8x8xf32>, vector<8x8xf32>, vector<8x8xf32> -> vector<8x8xf32>
    %cst_7 = arith.constant dense<0xFF800000> : vector<8xf32>
    %11 = vector.multi_reduction <maximumf>, %10, %cst_7 [1] : vector<8x8xf32> to vector<8xf32>
    %12 = vector.shape_cast %11 : vector<8xf32> to vector<8x1xf32>
    %13 = vector.broadcast %12 : vector<8x1xf32> to vector<8x8xf32>
    %14 = arith.subf %10, %13 : vector<8x8xf32>
    %15 = math.exp %14 : vector<8x8xf32>
    %cst_8 = arith.constant dense<0.000000e+00> : vector<8xf32>
    %16 = vector.multi_reduction <add>, %15, %cst_8 [1] : vector<8x8xf32> to vector<8xf32>
    %17 = vector.shape_cast %16 : vector<8xf32> to vector<8x1xf32>
    %18 = tpu.reciprocal %17 {approx = true} : vector<8x1xf32> -> vector<8x1xf32>
    %19 = vector.broadcast %18 : vector<8x1xf32> to vector<8x8xf32>
    %20 = arith.mulf %15, %19 : vector<8x8xf32>
    %cst_9 = arith.constant dense<0.000000e+00> : vector<8x8xf32>
    %21 = tpu.matmul %20, %9, %cst_9 {dimension_numbers = #tpu.dot_dimension_numbers<[1], [0], [0], [1], [0, 0, 1, 1], [], []>} : vector<8x8xf32>, vector<8x8xf32>, vector<8x8xf32> -> vector<8x8xf32>
    %c0_10 = arith.constant 0 : index
    %c0_11 = arith.constant 0 : index
    %22 = vector.load %arg10[%c0_10, %c0_11] : memref<8x32xf32, #tpu.memory_space<vmem>>, vector<8x8xf32>
    tpu.vector_store %arg10[%c0_10, %c0_11], %21 {strides = array<i32>} : memref<8x32xf32, #tpu.memory_space<vmem>>, vector<8x8xf32>,
    %23 = vector.extract_strided_slice %6 {offsets = [0, 8], sizes = [8, 8], strides = [1, 1]} : vector<8x96xf32> to vector<8x8xf32>
    %24 = vector.extract_strided_slice %6 {offsets = [0, 40], sizes = [8, 8], strides = [1, 1]} : vector<8x96xf32> to vector<8x8xf32>
    %25 = vector.extract_strided_slice %6 {offsets = [0, 72], sizes = [8, 8], strides = [1, 1]} : vector<8x96xf32> to vector<8x8xf32>
    %cst_12 = arith.constant dense<0.000000e+00> : vector<8x8xf32>
    %26 = tpu.matmul %23, %24, %cst_12 {dimension_numbers = #tpu.dot_dimension_numbers<[1], [1], [0], [0], [0, 0, 1, 0], [], []>} : vector<8x8xf32>, vector<8x8xf32>, vector<8x8xf32> -> vector<8x8xf32>
    %cst_13 = arith.constant dense<0xFF800000> : vector<8xf32>
    %27 = vector.multi_reduction <maximumf>, %26, %cst_13 [1] : vector<8x8xf32> to vector<8xf32>
    %28 = vector.shape_cast %27 : vector<8xf32> to vector<8x1xf32>
    %29 = vector.broadcast %28 : vector<8x1xf32> to vector<8x8xf32>
    %30 = arith.subf %26, %29 : vector<8x8xf32>
    %31 = math.exp %30 : vector<8x8xf32>
    %cst_14 = arith.constant dense<0.000000e+00> : vector<8xf32>
    %32 = vector.multi_reduction <add>, %31, %cst_14 [1] : vector<8x8xf32> to vector<8xf32>
    %33 = vector.shape_cast %32 : vector<8xf32> to vector<8x1xf32>
    %34 = tpu.reciprocal %33 {approx = true} : vector<8x1xf32> -> vector<8x1xf32>
    %35 = vector.broadcast %34 : vector<8x1xf32> to vector<8x8xf32>
    %36 = arith.mulf %31, %35 : vector<8x8xf32>
    %cst_15 = arith.constant dense<0.000000e+00> : vector<8x8xf32>
    %37 = tpu.matmul %36, %25, %cst_15 {dimension_numbers = #tpu.dot_dimension_numbers<[1], [0], [0], [1], [0, 0, 1, 1], [], []>} : vector<8x8xf32>, vector<8x8xf32>, vector<8x8xf32> -> vector<8x8xf32>
    %c0_16 = arith.constant 0 : index
    %c8 = arith.constant 8 : index
    %38 = vector.load %arg10[%c0_16, %c8] : memref<8x32xf32, #tpu.memory_space<vmem>>, vector<8x8xf32>
    tpu.vector_store %arg10[%c0_16, %c8], %37 {strides = array<i32>} : memref<8x32xf32, #tpu.memory_space<vmem>>, vector<8x8xf32>,
    %39 = vector.extract_strided_slice %6 {offsets = [0, 16], sizes = [8, 8], strides = [1, 1]} : vector<8x96xf32> to vector<8x8xf32>
    %40 = vector.extract_strided_slice %6 {offsets = [0, 48], sizes = [8, 8], strides = [1, 1]} : vector<8x96xf32> to vector<8x8xf32>
    %41 = vector.extract_strided_slice %6 {offsets = [0, 80], sizes = [8, 8], strides = [1, 1]} : vector<8x96xf32> to vector<8x8xf32>
    %cst_17 = arith.constant dense<0.000000e+00> : vector<8x8xf32>
    %42 = tpu.matmul %39, %40, %cst_17 {dimension_numbers = #tpu.dot_dimension_numbers<[1], [1], [0], [0], [0, 0, 1, 0], [], []>} : vector<8x8xf32>, vector<8x8xf32>, vector<8x8xf32> -> vector<8x8xf32>
    %cst_18 = arith.constant dense<0xFF800000> : vector<8xf32>
    %43 = vector.multi_reduction <maximumf>, %42, %cst_18 [1] : vector<8x8xf32> to vector<8xf32>
    %44 = vector.shape_cast %43 : vector<8xf32> to vector<8x1xf32>
    %45 = vector.broadcast %44 : vector<8x1xf32> to vector<8x8xf32>
    %46 = arith.subf %42, %45 : vector<8x8xf32>
    %47 = math.exp %46 : vector<8x8xf32>
    %cst_19 = arith.constant dense<0.000000e+00> : vector<8xf32>
    %48 = vector.multi_reduction <add>, %47, %cst_19 [1] : vector<8x8xf32> to vector<8xf32>
    %49 = vector.shape_cast %48 : vector<8xf32> to vector<8x1xf32>
    %50 = tpu.reciprocal %49 {approx = true} : vector<8x1xf32> -> vector<8x1xf32>
    %51 = vector.broadcast %50 : vector<8x1xf32> to vector<8x8xf32>
    %52 = arith.mulf %47, %51 : vector<8x8xf32>
    %cst_20 = arith.constant dense<0.000000e+00> : vector<8x8xf32>
    %53 = tpu.matmul %52, %41, %cst_20 {dimension_numbers = #tpu.dot_dimension_numbers<[1], [0], [0], [1], [0, 0, 1, 1], [], []>} : vector<8x8xf32>, vector<8x8xf32>, vector<8x8xf32> -> vector<8x8xf32>
    %c0_21 = arith.constant 0 : index
    %c16 = arith.constant 16 : index
    %54 = vector.load %arg10[%c0_21, %c16] : memref<8x32xf32, #tpu.memory_space<vmem>>, vector<8x8xf32>
    tpu.vector_store %arg10[%c0_21, %c16], %53 {strides = array<i32>} : memref<8x32xf32, #tpu.memory_space<vmem>>, vector<8x8xf32>,
    %55 = vector.extract_strided_slice %6 {offsets = [0, 24], sizes = [8, 8], strides = [1, 1]} : vector<8x96xf32> to vector<8x8xf32>
    %56 = vector.extract_strided_slice %6 {offsets = [0, 56], sizes = [8, 8], strides = [1, 1]} : vector<8x96xf32> to vector<8x8xf32>
    %57 = vector.extract_strided_slice %6 {offsets = [0, 88], sizes = [8, 8], strides = [1, 1]} : vector<8x96xf32> to vector<8x8xf32>
    %cst_22 = arith.constant dense<0.000000e+00> : vector<8x8xf32>
    %58 = tpu.matmul %55, %56, %cst_22 {dimension_numbers = #tpu.dot_dimension_numbers<[1], [1], [0], [0], [0, 0, 1, 0], [], []>} : vector<8x8xf32>, vector<8x8xf32>, vector<8x8xf32> -> vector<8x8xf32>
    %cst_23 = arith.constant dense<0xFF800000> : vector<8xf32>
    %59 = vector.multi_reduction <maximumf>, %58, %cst_23 [1] : vector<8x8xf32> to vector<8xf32>
    %60 = vector.shape_cast %59 : vector<8xf32> to vector<8x1xf32>
    %61 = vector.broadcast %60 : vector<8x1xf32> to vector<8x8xf32>
    %62 = arith.subf %58, %61 : vector<8x8xf32>
    %63 = math.exp %62 : vector<8x8xf32>
    %cst_24 = arith.constant dense<0.000000e+00> : vector<8xf32>
    %64 = vector.multi_reduction <add>, %63, %cst_24 [1] : vector<8x8xf32> to vector<8xf32>
    %65 = vector.shape_cast %64 : vector<8xf32> to vector<8x1xf32>
    %66 = tpu.reciprocal %65 {approx = true} : vector<8x1xf32> -> vector<8x1xf32>
    %67 = vector.broadcast %66 : vector<8x1xf32> to vector<8x8xf32>
    %68 = arith.mulf %63, %67 : vector<8x8xf32>
    %cst_25 = arith.constant dense<0.000000e+00> : vector<8x8xf32>
    %69 = tpu.matmul %68, %57, %cst_25 {dimension_numbers = #tpu.dot_dimension_numbers<[1], [0], [0], [1], [0, 0, 1, 1], [], []>} : vector<8x8xf32>, vector<8x8xf32>, vector<8x8xf32> -> vector<8x8xf32>
    %c0_26 = arith.constant 0 : index
    %c24 = arith.constant 24 : index
    %70 = vector.load %arg10[%c0_26, %c24] : memref<8x32xf32, #tpu.memory_space<vmem>>, vector<8x8xf32>
    tpu.vector_store %arg10[%c0_26, %c24], %69 {strides = array<i32>} : memref<8x32xf32, #tpu.memory_space<vmem>>, vector<8x8xf32>,
    %c0_27 = arith.constant 0 : index
    %c0_28 = arith.constant 0 : index
    %71 = vector.load %arg10[%c0_27, %c0_28] : memref<8x32xf32, #tpu.memory_space<vmem>>, vector<8x32xf32>
    %c0_29 = arith.constant 0 : index
    %c0_30 = arith.constant 0 : index
    %72 = vector.load %arg4[%c0_29, %c0_30] : memref<32x32xf32, #tpu.memory_space<vmem>>, vector<32x32xf32>
    %cst_31 = arith.constant dense<0.000000e+00> : vector<8x32xf32>
    %73 = tpu.matmul %71, %72, %cst_31 {dimension_numbers = #tpu.dot_dimension_numbers<[1], [0], [0], [1], [0, 0, 1, 1], [], []>} : vector<8x32xf32>, vector<32x32xf32>, vector<8x32xf32> -> vector<8x32xf32>
    %c0_32 = arith.constant 0 : index
    %c0_33 = arith.constant 0 : index
    %74 = vector.load %arg8[%c0_32, %c0_33] : memref<6x32xf32, #tpu.memory_space<vmem>>, vector<6x32xf32>
    %75 = vector.extract_strided_slice %74 {offsets = [0, 0], sizes = [1, 32], strides = [1, 1]} : vector<6x32xf32> to vector<1x32xf32>
    %76 = vector.extract_strided_slice %74 {offsets = [1, 0], sizes = [1, 32], strides = [1, 1]} : vector<6x32xf32> to vector<1x32xf32>
    %77 = vector.extract_strided_slice %74 {offsets = [2, 0], sizes = [1, 32], strides = [1, 1]} : vector<6x32xf32> to vector<1x32xf32>
    %78 = vector.extract_strided_slice %74 {offsets = [3, 0], sizes = [1, 32], strides = [1, 1]} : vector<6x32xf32> to vector<1x32xf32>
    %79 = vector.extract_strided_slice %74 {offsets = [4, 0], sizes = [1, 32], strides = [1, 1]} : vector<6x32xf32> to vector<1x32xf32>
    %80 = vector.extract_strided_slice %74 {offsets = [5, 0], sizes = [1, 32], strides = [1, 1]} : vector<6x32xf32> to vector<1x32xf32>
    %81 = arith.addf %1, %73 : vector<8x32xf32>
    %82 = vector.broadcast %75 : vector<1x32xf32> to vector<8x32xf32>
    %83 = arith.addf %81, %82 : vector<8x32xf32>
    %cst_34 = arith.constant dense<0.000000e+00> : vector<8xf32>
    %84 = vector.multi_reduction <add>, %83, %cst_34 [1] : vector<8x32xf32> to vector<8xf32>
    %85 = vector.shape_cast %84 : vector<8xf32> to vector<8x1xf32>
    %cst_35 = arith.constant 3.200000e+01 : f32
    %86 = vector.broadcast %cst_35 : f32 to vector<8x1xf32>
    %87 = arith.divf %85, %86 : vector<8x1xf32>
    %88 = arith.mulf %83, %83 : vector<8x32xf32>
    %cst_36 = arith.constant dense<0.000000e+00> : vector<8xf32>
    %89 = vector.multi_reduction <add>, %88, %cst_36 [1] : vector<8x32xf32> to vector<8xf32>
    %90 = vector.shape_cast %89 : vector<8xf32> to vector<8x1xf32>
    %cst_37 = arith.constant 3.200000e+01 : f32
    %91 = vector.broadcast %cst_37 : f32 to vector<8x1xf32>
    %92 = arith.divf %90, %91 : vector<8x1xf32>
    %93 = arith.mulf %87, %87 : vector<8x1xf32>
    %94 = arith.subf %92, %93 : vector<8x1xf32>
    %cst_38 = arith.constant 0.000000e+00 : f32
    %95 = vector.broadcast %cst_38 : f32 to vector<8x1xf32>
    %96 = arith.maximumf %94, %95 : vector<8x1xf32>
    %97 = vector.broadcast %87 : vector<8x1xf32> to vector<8x32xf32>
    %98 = arith.subf %83, %97 : vector<8x32xf32>
    %cst_39 = arith.constant 9.99999974E-6 : f32
    %99 = vector.broadcast %cst_39 : f32 to vector<8x1xf32>
    %100 = arith.addf %96, %99 : vector<8x1xf32>
    %101 = math.rsqrt %100 : vector<8x1xf32>
    %102 = vector.broadcast %101 : vector<8x1xf32> to vector<8x32xf32>
    %103 = arith.mulf %98, %102 : vector<8x32xf32>
    %104 = vector.broadcast %77 : vector<1x32xf32> to vector<8x32xf32>
    %105 = arith.mulf %103, %104 : vector<8x32xf32>
    %106 = vector.broadcast %78 : vector<1x32xf32> to vector<8x32xf32>
    %107 = arith.addf %105, %106 : vector<8x32xf32>
    %c0_40 = arith.constant 0 : index
    %c0_41 = arith.constant 0 : index
    %108 = vector.load %arg5[%c0_40, %c0_41] : memref<32x64xf32, #tpu.memory_space<vmem>>, vector<32x64xf32>
    %cst_42 = arith.constant dense<0.000000e+00> : vector<8x64xf32>
    %109 = tpu.matmul %107, %108, %cst_42 {dimension_numbers = #tpu.dot_dimension_numbers<[1], [0], [0], [1], [0, 0, 1, 1], [], []>} : vector<8x32xf32>, vector<32x64xf32>, vector<8x64xf32> -> vector<8x64xf32>
    %c0_43 = arith.constant 0 : index
    %c0_44 = arith.constant 0 : index
    %110 = vector.load %arg6[%c0_43, %c0_44] : memref<1x64xf32, #tpu.memory_space<vmem>>, vector<1x64xf32>
    %111 = vector.broadcast %110 : vector<1x64xf32> to vector<8x64xf32>
    %112 = arith.addf %109, %111 : vector<8x64xf32>
    %cst_45 = arith.constant 0.000000e+00 : f32
    %113 = vector.broadcast %cst_45 : f32 to vector<8x64xf32>
    %114 = arith.maximumf %112, %113 : vector<8x64xf32>
    %c0_46 = arith.constant 0 : index
    %c0_47 = arith.constant 0 : index
    %115 = vector.load %arg7[%c0_46, %c0_47] : memref<64x32xf32, #tpu.memory_space<vmem>>, vector<64x32xf32>
    %cst_48 = arith.constant dense<0.000000e+00> : vector<8x32xf32>
    %116 = tpu.matmul %114, %115, %cst_48 {dimension_numbers = #tpu.dot_dimension_numbers<[1], [0], [0], [1], [0, 0, 1, 1], [], []>} : vector<8x64xf32>, vector<64x32xf32>, vector<8x32xf32> -> vector<8x32xf32>
    %117 = vector.broadcast %76 : vector<1x32xf32> to vector<8x32xf32>
    %118 = arith.addf %116, %117 : vector<8x32xf32>
    %119 = arith.addf %107, %118 : vector<8x32xf32>
    %cst_49 = arith.constant dense<0.000000e+00> : vector<8xf32>
    %120 = vector.multi_reduction <add>, %119, %cst_49 [1] : vector<8x32xf32> to vector<8xf32>
    %121 = vector.shape_cast %120 : vector<8xf32> to vector<8x1xf32>
    %cst_50 = arith.constant 3.200000e+01 : f32
    %122 = vector.broadcast %cst_50 : f32 to vector<8x1xf32>
    %123 = arith.divf %121, %122 : vector<8x1xf32>
    %124 = arith.mulf %119, %119 : vector<8x32xf32>
    %cst_51 = arith.constant dense<0.000000e+00> : vector<8xf32>
    %125 = vector.multi_reduction <add>, %124, %cst_51 [1] : vector<8x32xf32> to vector<8xf32>
    %126 = vector.shape_cast %125 : vector<8xf32> to vector<8x1xf32>
    %cst_52 = arith.constant 3.200000e+01 : f32
    %127 = vector.broadcast %cst_52 : f32 to vector<8x1xf32>
    %128 = arith.divf %126, %127 : vector<8x1xf32>
    %129 = arith.mulf %123, %123 : vector<8x1xf32>
    %130 = arith.subf %128, %129 : vector<8x1xf32>
    %cst_53 = arith.constant 0.000000e+00 : f32
    %131 = vector.broadcast %cst_53 : f32 to vector<8x1xf32>
    %132 = arith.maximumf %130, %131 : vector<8x1xf32>
    %133 = vector.broadcast %123 : vector<8x1xf32> to vector<8x32xf32>
    %134 = arith.subf %119, %133 : vector<8x32xf32>
    %cst_54 = arith.constant 9.99999974E-6 : f32
    %135 = vector.broadcast %cst_54 : f32 to vector<8x1xf32>
    %136 = arith.addf %132, %135 : vector<8x1xf32>
    %137 = math.rsqrt %136 : vector<8x1xf32>
    %138 = vector.broadcast %137 : vector<8x1xf32> to vector<8x32xf32>
    %139 = arith.mulf %134, %138 : vector<8x32xf32>
    %140 = vector.broadcast %79 : vector<1x32xf32> to vector<8x32xf32>
    %141 = arith.mulf %139, %140 : vector<8x32xf32>
    %142 = vector.broadcast %80 : vector<1x32xf32> to vector<8x32xf32>
    %143 = arith.addf %141, %142 : vector<8x32xf32>
    %144 = vector.shape_cast %143 : vector<8x32xf32> to vector<1x8x32xf32>
    %c0_55 = arith.constant 0 : index
    %c0_56 = arith.constant 0 : index
    %c0_57 = arith.constant 0 : index
    %145 = vector.load %arg9[%c0_55, %c0_56, %c0_57] : memref<1x8x32xf32, #tpu.memory_space<vmem>>, vector<1x8x32xf32>
    tpu.vector_store %arg9[%c0_55, %c0_56, %c0_57], %144 {strides = array<i32>} : memref<1x8x32xf32, #tpu.memory_space<vmem>>, vector<1x8x32xf32>,
    return
  }
  func.func @transform_0(%arg0: i32) -> (i32, i32, i32) {
    %c0_i32 = arith.constant 0 : i32
    %c0_i32_0 = arith.constant 0 : i32
    %c0_i32_1 = arith.constant 0 : i32
    return %arg0, %c0_i32, %c0_i32_0 : i32, i32, i32
  }
  func.func @transform_1(%arg0: i32) -> (i32, i32) {
    %c0_i32 = arith.constant 0 : i32
    %c0_i32_0 = arith.constant 0 : i32
    %c0_i32_1 = arith.constant 0 : i32
    return %c0_i32, %c0_i32_0 : i32, i32
  }
  func.func @transform_2(%arg0: i32) -> (i32, i32) {
    %c0_i32 = arith.constant 0 : i32
    %c0_i32_0 = arith.constant 0 : i32
    %c0_i32_1 = arith.constant 0 : i32
    return %c0_i32, %c0_i32_0 : i32, i32
  }
  func.func @transform_3(%arg0: i32) -> (i32, i32) {
    %c0_i32 = arith.constant 0 : i32
    %c0_i32_0 = arith.constant 0 : i32
    %c0_i32_1 = arith.constant 0 : i32
    return %c0_i32, %c0_i32_0 : i32, i32
  }
  func.func @transform_4(%arg0: i32) -> (i32, i32) {
    %c0_i32 = arith.constant 0 : i32
    %c0_i32_0 = arith.constant 0 : i32
    %c0_i32_1 = arith.constant 0 : i32
    return %c0_i32, %c0_i32_0 : i32, i32
  }
  func.func @transform_5(%arg0: i32) -> (i32, i32) {
    %c0_i32 = arith.constant 0 : i32
    %c0_i32_0 = arith.constant 0 : i32
    %c0_i32_1 = arith.constant 0 : i32
    return %c0_i32, %c0_i32_0 : i32, i32
  }
  func.func @transform_6(%arg0: i32) -> (i32, i32) {
    %c0_i32 = arith.constant 0 : i32
    %c0_i32_0 = arith.constant 0 : i32
    %c0_i32_1 = arith.constant 0 : i32
    return %c0_i32, %c0_i32_0 : i32, i32
  }
  func.func @transform_7(%arg0: i32) -> (i32, i32) {
    %c0_i32 = arith.constant 0 : i32
    %c0_i32_0 = arith.constant 0 : i32
    %c0_i32_1 = arith.constant 0 : i32
    return %c0_i32, %c0_i32_0 : i32, i32
  }
  func.func @transform_8(%arg0: i32) -> (i32, i32, i32) {
    %c0_i32 = arith.constant 0 : i32
    %c0_i32_0 = arith.constant 0 : i32
    %c0_i32_1 = arith.constant 0 : i32
    return %arg0, %c0_i32, %c0_i32_0 : i32, i32, i32
  }
}

</mosaic_0001>

<llo_original>
// kernel: tpu_custom_call.1
$region0: #{tpu_custom_call.1}
  #allocation0 [shape = 'u32[]', space=smem, size = 0x4, offset = 0x4, fixed_abs, tag = 'smem constant byte address 0x4 - core index']
  #allocation1 [shape = 'u32[144,128]{1,0:T(1,128)}', space=vmem, size = 0x12000, scoped, tag = 'internal scratch']
  #allocation2 [shape = 'f32[8,32]{1,0:T(8,128)}', space=vmem, size = 0x1000, scoped, tag = 'scratch operand']
  %s0 = inlined_call_operand.hbm [shape: f32[2,8,32], index: 0, kind: input, shape index: {}]
  %s1 = inlined_call_operand.vmem [shape: f32[32,96], index: 1, kind: input, shape index: {}]
  %s2 = inlined_call_operand.vmem [shape: f32[1,96], index: 2, kind: input, shape index: {}]
  %s3 = inlined_call_operand.vmem [shape: f32[32,32], index: 3, kind: input, shape index: {}]
  %s4 = inlined_call_operand.vmem [shape: f32[32,64], index: 4, kind: input, shape index: {}]
  %s5 = inlined_call_operand.vmem [shape: f32[1,64], index: 5, kind: input, shape index: {}]
  %s6 = inlined_call_operand.vmem [shape: f32[64,32], index: 6, kind: input, shape index: {}]
  %s7 = inlined_call_operand.vmem [shape: f32[6,32], index: 7, kind: input, shape index: {}]
  %s8 = inlined_call_operand.hbm [shape: f32[2,8,32], index: 8, kind: output, shape index: {}]
  %s9 = sld [smem:[#allocation0]]
  $region69: #{tpu_custom_call.1} parent=0
    _
  %s11 = ssub.s32 1, %s9
  %s12 = scalar_select 0, %s11, %s9
  $region1: #{tpu_custom_call.1} parent=0
    #allocation3 [shape = 'u8[8192]{0}', space=vmem, size = 0x2000, scoped, tag = 'input window, operand 0']
    #allocation4 [shape = 's32[2]{0}', space=sflag, size = 0x8, scoped, tag = 'scoped memory for tpu_custom_call.1']
    #allocation5 [shape = 's32[2]{0}', space=sflag, size = 0x8, scoped, tag = 'scoped memory for tpu_custom_call.1']
    #allocation6 [shape = 'u8[8192]{0}', space=vmem, size = 0x2000, scoped, tag = 'output window, operand 0']
    %13 = vsyncpa [#allocation4], 0
    %s14 = scalar_lea.sflag [#allocation4], 1
    %15 = vsyncpa %s14, 0
    %16 = vsyncpa [#allocation5], 0
    %s17 = scalar_lea.sflag [#allocation5], 1
    %18 = vsyncpa %s17, 0
    loop: start=0, step=1, limit=4
    $region2: #{tpu_custom_call.1} parent=1 // loop_pre_header
      _
    $region3: #{tpu_custom_call.1} parent=1 // loop_header
      %s20 = sphi 0, %s24
      %p21 = scmp.ge.s32.totalorder %s20, 4
      %s30 = sphi 0, %s32
      %s33 = sphi 0, %s30
      %s34 = sphi 0, %s33
      %s50 = sphi 0, %s34
      %s54 = sphi 0, %s54
      %s56 = sphi 0, %s54
      %s57 = sphi 0, %s56
      %s71 = sphi 0, %s57
      %s75 = sphi 0, %s75
      %s77 = sphi 0, %s75
      %s78 = sphi 0, %s77
      %s92 = sphi 0, %s78
      %s96 = sphi 0, %s96
      %s98 = sphi 0, %s96
      %s99 = sphi 0, %s98
      %s113 = sphi 0, %s99
      %s117 = sphi 0, %s117
      %s119 = sphi 0, %s117
      %s120 = sphi 0, %s119
      %s134 = sphi 0, %s120
      %s138 = sphi 0, %s138
      %s140 = sphi 0, %s138
      %s141 = sphi 0, %s140
      %s155 = sphi 0, %s141
      %s159 = sphi 0, %s159
      %s161 = sphi 0, %s159
      %s162 = sphi 0, %s161
      %s176 = sphi 0, %s162
      %s180 = sphi 0, %s180
      %s182 = sphi 0, %s180
      %s183 = sphi 0, %s182
      %s197 = sphi 0, %s183
      %s203 = sphi 0, %s205
      %s206 = sphi 0, %s203
      %s207 = sphi 0, %s206
      %s223 = sphi 0, %s207
    $region4: #{tpu_custom_call.1} parent=1 // loop_header_branch
      %23 = sbr.rel (%p21) target = $region8
    $region5: #{tpu_custom_call.1} parent=1 // loop_body
      %s25 = ssub.s32 %s20, 1
      %s26 = ssub.s32 %s20, 2
      %s27 = sadd.s32 %s20, 1
      %s28 = ssub.s32 %s20, %s27
      %p29 = scmp.eq.s32.totalorder %s28, 0
      %s31 = sadd.s32 %s30, 1
      %s32 = scalar_select %p29, %s30, %s31
      %p35 = pneg %p29
      %p36 = scmp.eq.s32.totalorder %s20, 1
      %p37 = por %p35, %p36
      %p38 = scmp.ne.s32.totalorder %s30, %s33
      %p39 = scmp.eq.s32.totalorder %s20, 0
      %p40 = por %p38, %p39
      %p41 = scmp.ne.s32.totalorder %s30, %s33
      %p42 = scmp.eq.s32.totalorder %s25, 1
      %p43 = por %p41, %p42
      %p44 = scmp.ne.s32.totalorder %s33, %s34
      %p45 = scmp.eq.s32.totalorder %s25, 0
      %p46 = por %p44, %p45
      %p47 = scmp.ne.s32.totalorder %s33, %s34
      %p48 = scmp.eq.s32.totalorder %s26, 1
      %p49 = por %p47, %p48
      %p51 = scmp.ne.s32.totalorder %s34, %s50
      %p52 = scmp.eq.s32.totalorder %s26, 0
      %p53 = por %p51, %p52
      %s55 = sadd.s32 %s54, 1
      %p58 = scmp.eq.s32.totalorder %s20, 1
      %p59 = scmp.ne.s32.totalorder %s54, %s56
      %p60 = scmp.eq.s32.totalorder %s20, 0
      %p61 = por %p59, %p60
      %p62 = scmp.ne.s32.totalorder %s54, %s56
      %p63 = scmp.eq.s32.totalorder %s25, 1
      %p64 = por %p62, %p63
      %p65 = scmp.ne.s32.totalorder %s56, %s57
      %p66 = scmp.eq.s32.totalorder %s25, 0
      %p67 = por %p65, %p66
      %p68 = scmp.ne.s32.totalorder %s56, %s57
      %p69 = scmp.eq.s32.totalorder %s26, 1
      %p70 = por %p68, %p69
      %p72 = scmp.ne.s32.totalorder %s57, %s71
      %p73 = scmp.eq.s32.totalorder %s26, 0
      %p74 = por %p72, %p73
      %s76 = sadd.s32 %s75, 1
      %p79 = scmp.eq.s32.totalorder %s20, 1
      %p80 = scmp.ne.s32.totalorder %s75, %s77
      %p81 = scmp.eq.s32.totalorder %s20, 0
      %p82 = por %p80, %p81
      %p83 = scmp.ne.s32.totalorder %s75, %s77
      %p84 = scmp.eq.s32.totalorder %s25, 1
      %p85 = por %p83, %p84
      %p86 = scmp.ne.s32.totalorder %s77, %s78
      %p87 = scmp.eq.s32.totalorder %s25, 0
      %p88 = por %p86, %p87
      %p89 = scmp.ne.s32.totalorder %s77, %s78
      %p90 = scmp.eq.s32.totalorder %s26, 1
      %p91 = por %p89, %p90
      %p93 = scmp.ne.s32.totalorder %s78, %s92
      %p94 = scmp.eq.s32.totalorder %s26, 0
      %p95 = por %p93, %p94
      %s97 = sadd.s32 %s96, 1
      %p100 = scmp.eq.s32.totalorder %s20, 1
      %p101 = scmp.ne.s32.totalorder %s96, %s98
      %p102 = scmp.eq.s32.totalorder %s20, 0
      %p103 = por %p101, %p102
      %p104 = scmp.ne.s32.totalorder %s96, %s98
      %p105 = scmp.eq.s32.totalorder %s25, 1
      %p106 = por %p104, %p105
      %p107 = scmp.ne.s32.totalorder %s98, %s99
      %p108 = scmp.eq.s32.totalorder %s25, 0
      %p109 = por %p107, %p108
      %p110 = scmp.ne.s32.totalorder %s98, %s99
      %p111 = scmp.eq.s32.totalorder %s26, 1
      %p112 = por %p110, %p111
      %p114 = scmp.ne.s32.totalorder %s99, %s113
      %p115 = scmp.eq.s32.totalorder %s26, 0
      %p116 = por %p114, %p115
      %s118 = sadd.s32 %s117, 1
      %p121 = scmp.eq.s32.totalorder %s20, 1
      %p122 = scmp.ne.s32.totalorder %s117, %s119
      %p123 = scmp.eq.s32.totalorder %s20, 0
      %p124 = por %p122, %p123
      %p125 = scmp.ne.s32.totalorder %s117, %s119
      %p126 = scmp.eq.s32.totalorder %s25, 1
      %p127 = por %p125, %p126
      %p128 = scmp.ne.s32.totalorder %s119, %s120
      %p129 = scmp.eq.s32.totalorder %s25, 0
      %p130 = por %p128, %p129
      %p131 = scmp.ne.s32.totalorder %s119, %s120
      %p132 = scmp.eq.s32.totalorder %s26, 1
      %p133 = por %p131, %p132
      %p135 = scmp.ne.s32.totalorder %s120, %s134
      %p136 = scmp.eq.s32.totalorder %s26, 0
      %p137 = por %p135, %p136
      %s139 = sadd.s32 %s138, 1
      %p142 = scmp.eq.s32.totalorder %s20, 1
      %p143 = scmp.ne.s32.totalorder %s138, %s140
      %p144 = scmp.eq.s32.totalorder %s20, 0
      %p145 = por %p143, %p144
      %p146 = scmp.ne.s32.totalorder %s138, %s140
      %p147 = scmp.eq.s32.totalorder %s25, 1
      %p148 = por %p146, %p147
      %p149 = scmp.ne.s32.totalorder %s140, %s141
      %p150 = scmp.eq.s32.totalorder %s25, 0
      %p151 = por %p149, %p150
      %p152 = scmp.ne.s32.totalorder %s140, %s141
      %p153 = scmp.eq.s32.totalorder %s26, 1
      %p154 = por %p152, %p153
      %p156 = scmp.ne.s32.totalorder %s141, %s155
      %p157 = scmp.eq.s32.totalorder %s26, 0
      %p158 = por %p156, %p157
      %s160 = sadd.s32 %s159, 1
      %p163 = scmp.eq.s32.totalorder %s20, 1
      %p164 = scmp.ne.s32.totalorder %s159, %s161
      %p165 = scmp.eq.s32.totalorder %s20, 0
      %p166 = por %p164, %p165
      %p167 = scmp.ne.s32.totalorder %s159, %s161
      %p168 = scmp.eq.s32.totalorder %s25, 1
      %p169 = por %p167, %p168
      %p170 = scmp.ne.s32.totalorder %s161, %s162
      %p171 = scmp.eq.s32.totalorder %s25, 0
      %p172 = por %p170, %p171
      %p173 = scmp.ne.s32.totalorder %s161, %s162
      %p174 = scmp.eq.s32.totalorder %s26, 1
      %p175 = por %p173, %p174
      %p177 = scmp.ne.s32.totalorder %s162, %s176
      %p178 = scmp.eq.s32.totalorder %s26, 0
      %p179 = por %p177, %p178
      %s181 = sadd.s32 %s180, 1
      %p184 = scmp.eq.s32.totalorder %s20, 1
      %p185 = scmp.ne.s32.totalorder %s180, %s182
      %p186 = scmp.eq.s32.totalorder %s20, 0
      %p187 = por %p185, %p186
      %p188 = scmp.ne.s32.totalorder %s180, %s182
      %p189 = scmp.eq.s32.totalorder %s25, 1
      %p190 = por %p188, %p189
      %p191 = scmp.ne.s32.totalorder %s182, %s183
      %p192 = scmp.eq.s32.totalorder %s25, 0
      %p193 = por %p191, %p192
      %p194 = scmp.ne.s32.totalorder %s182, %s183
      %p195 = scmp.eq.s32.totalorder %s26, 1
      %p196 = por %p194, %p195
      %p198 = scmp.ne.s32.totalorder %s183, %s197
      %p199 = scmp.eq.s32.totalorder %s26, 0
      %p200 = por %p198, %p199
      %s201 = ssub.s32 %s20, %s27
      %p202 = scmp.eq.s32.totalorder %s201, 0
      %s204 = sadd.s32 %s203, 1
      %s205 = scalar_select %p202, %s203, %s204
      %p208 = pneg %p202
      %p209 = scmp.eq.s32.totalorder %s20, 1
      %p210 = por %p208, %p209
      %p211 = scmp.ne.s32.totalorder %s203, %s206
      %p212 = scmp.eq.s32.totalorder %s20, 0
      %p213 = por %p211, %p212
      %p214 = scmp.ne.s32.totalorder %s203, %s206
      %p215 = scmp.eq.s32.totalorder %s25, 1
      %p216 = por %p214, %p215
      %p217 = scmp.ne.s32.totalorder %s206, %s207
      %p218 = scmp.eq.s32.totalorder %s25, 0
      %p219 = por %p217, %p218
      %p220 = scmp.ne.s32.totalorder %s206, %s207
      %p221 = scmp.eq.s32.totalorder %s26, 1
      %p222 = por %p220, %p221
      %p224 = scmp.ne.s32.totalorder %s207, %s223
      %p225 = scmp.eq.s32.totalorder %s26, 0
      %p226 = por %p224, %p225
      %p227 = scmp.le.s32.totalorder 1, %s20
      %p228 = scmp.lt.s32.totalorder %s20, 3
      %p229 = pnand %p227, %p228
      %p230 = pneg %p229
      // Predicated region
      $region9: #{tpu_custom_call.1} parent=5 // pred_check
        _
      $region10: #{tpu_custom_call.1} parent=5 // pred_check_branch
        %232 = sbr.rel (%p229) target = $region12
      $region11: #{tpu_custom_call.1} parent=5 // pred_region
        %s233 = ssub.s32 %s20, 1
        // Predicated region
        $region13: #{tpu_custom_call.1} parent=11 // pred_check
          %p234 = pneg %p67
        $region14: #{tpu_custom_call.1} parent=11 // pred_check_branch
          %236 = sbr.rel (%p234) target = $region16
        $region15: #{tpu_custom_call.1} parent=11 // pred_region
          _
        $region16: #{tpu_custom_call.1} parent=11 // pred_fallthru
          _
        // Predicated region
        $region17: #{tpu_custom_call.1} parent=11 // pred_check
          %p237 = pneg %p88
        $region18: #{tpu_custom_call.1} parent=11 // pred_check_branch
          %239 = sbr.rel (%p237) target = $region20
        $region19: #{tpu_custom_call.1} parent=11 // pred_region
          _
        $region20: #{tpu_custom_call.1} parent=11 // pred_fallthru
          _
        // Predicated region
        $region21: #{tpu_custom_call.1} parent=11 // pred_check
          %p240 = pneg %p109
        $region22: #{tpu_custom_call.1} parent=11 // pred_check_branch
          %242 = sbr.rel (%p240) target = $region24
        $region23: #{tpu_custom_call.1} parent=11 // pred_region
          _
        $region24: #{tpu_custom_call.1} parent=11 // pred_fallthru
          _
        // Predicated region
        $region25: #{tpu_custom_call.1} parent=11 // pred_check
          %p243 = pneg %p130
        $region26: #{tpu_custom_call.1} parent=11 // pred_check_branch
          %245 = sbr.rel (%p243) target = $region28
        $region27: #{tpu_custom_call.1} parent=11 // pred_region
          _
        $region28: #{tpu_custom_call.1} parent=11 // pred_fallthru
          _
        // Predicated region
        $region29: #{tpu_custom_call.1} parent=11 // pred_check
          %p246 = pneg %p151
        $region30: #{tpu_custom_call.1} parent=11 // pred_check_branch
          %248 = sbr.rel (%p246) target = $region32
        $region31: #{tpu_custom_call.1} parent=11 // pred_region
          _
        $region32: #{tpu_custom_call.1} parent=11 // pred_fallthru
          _
        // Predicated region
        $region33: #{tpu_custom_call.1} parent=11 // pred_check
          %p249 = pneg %p172
        $region34: #{tpu_custom_call.1} parent=11 // pred_check_branch
          %251 = sbr.rel (%p249) target = $region36
        $region35: #{tpu_custom_call.1} parent=11 // pred_region
          _
        $region36: #{tpu_custom_call.1} parent=11 // pred_fallthru
          _
        // Predicated region
        $region37: #{tpu_custom_call.1} parent=11 // pred_check
          %p252 = pneg %p193
        $region38: #{tpu_custom_call.1} parent=11 // pred_check_branch
          %254 = sbr.rel (%p252) target = $region40
        $region39: #{tpu_custom_call.1} parent=11 // pred_region
          _
        $region40: #{tpu_custom_call.1} parent=11 // pred_fallthru
          _
      $region12: #{tpu_custom_call.1} parent=5 // pred_fallthru
        _
      %p255 = scmp.lt.s32.totalorder %s20, 2
      // Predicated region
      $region41: #{tpu_custom_call.1} parent=5 // pred_check
        %p256 = pneg %p255
      $region42: #{tpu_custom_call.1} parent=5 // pred_check_branch
        %258 = sbr.rel (%p256) target = $region44
      $region43: #{tpu_custom_call.1} parent=5 // pred_region
        // Predicated region
        $region45: #{tpu_custom_call.1} parent=43 // pred_check
          %p259 = pneg %p40
        $region46: #{tpu_custom_call.1} parent=43 // pred_check_branch
          %261 = sbr.rel (%p259) target = $region48
        $region47: #{tpu_custom_call.1} parent=43 // pred_region
          %s262 = sand.u32 %s30, 1
          %s263 = scalar_lea.sflag [#allocation4], %s262
          %s264 = sand.u32 %s30, 1
          %s265 = smul.addr %s264, 8
          %s266 = scalar_lea.vmem [#allocation3], %s265
          %s268 = ssub.s32 128, 128
          %269 = vsyncadd %s263, %s268
          %s270 = smul.addr %s20, 128
          %s271 = scalar_lea.hbm %s0, %s270
          %s273 = sshll.u32 %s266, 4
          %s274 = int_to_ptr.vmem [resolvable:$true] %s273
          %276 = dma.hbm_to_vmem [thread:$0]  %s271, 128, %s274, %s263
        $region48: #{tpu_custom_call.1} parent=43 // pred_fallthru
          _
      $region44: #{tpu_custom_call.1} parent=5 // pred_fallthru
        _
      %p277 = scmp.le.s32.totalorder 1, %s20
      %p278 = scmp.lt.s32.totalorder %s20, 3
      %p279 = pnand %p277, %p278
      %p280 = pneg %p279
      // Predicated region
      $region49: #{tpu_custom_call.1} parent=5 // pred_check
        _
      $region50: #{tpu_custom_call.1} parent=5 // pred_check_branch
        %282 = sbr.rel (%p279) target = $region52
      $region51: #{tpu_custom_call.1} parent=5 // pred_region
        %s283 = ssub.s32 %s20, 1
        %s284 = sand.u32 %s33, 1
        %s285 = scalar_lea.sflag [#allocation4], %s284
        %s286 = sand.u32 %s33, 1
        %s287 = smul.addr %s286, 8
        %s288 = scalar_lea.vmem [#allocation3], %s287
        // Predicated region
        $region53: #{tpu_custom_call.1} parent=51 // pred_check
          %p289 = pneg %p46
        $region54: #{tpu_custom_call.1} parent=51 // pred_check_branch
          %291 = sbr.rel (%p289) target = $region56
        $region55: #{tpu_custom_call.1} parent=51 // pred_region
          %292 = dma.done %s285, 128
        $region56: #{tpu_custom_call.1} parent=51 // pred_fallthru
          _
        %s293 = sand.u32 %s33, 1
        %s294 = scalar_lea.sflag [#allocation4], %s293
        %s295 = sand.u32 %s33, 1
        %s296 = smul.addr %s295, 8
        %s297 = scalar_lea.vmem [#allocation3], %s296
        %p298 = pneg %p46
        %p299 = pneg %p43
        %p300 = pneg %p67
        %p301 = pneg %p64
        %p302 = pneg %p88
        %p303 = pneg %p85
        %p304 = pneg %p109
        %p305 = pneg %p106
        %p306 = pneg %p130
        %p307 = pneg %p127
        %p308 = pneg %p151
        %p309 = pneg %p148
        %p310 = pneg %p172
        %p311 = pneg %p169
        %p312 = pneg %p193
        %p313 = pneg %p190
        %p314 = pneg %p219
        %p315 = pneg %p216
        %s316 = sand.u32 %s206, 1
        %s317 = scalar_lea.sflag [#allocation5], %s316
        %s318 = sand.u32 %s206, 1
        %s319 = smul.addr %s318, 8
        %s320 = scalar_lea.vmem [#allocation6], %s319
        %v321 = vld [vmem:[%s288] sm:$0xff]
        %v322 = vld [vmem:[%s1] sm:$0xff]
        %v323 = vld [vmem:[%s1 + $0x8] sm:$0xff]
        %v324 = vld [vmem:[%s1 + $0x10] sm:$0xff]
        %v325 = vld [vmem:[%s1 + $0x18] sm:$0xff]
        %v326 = vld [vmem:[%s2] sm:$0x1]
        %v328 = vlaneseq
        %v329 = vshrl.u32 %v328, 7
        %v330 = vsub.s32 0, %v329
        %v331 = vrot.slane %v326, %v330
        %vm333 = vcmask 261120
        %v335 = vsel %vm333, %v321, 0
        %337 = vmatprep.subr.mxu0 0.0
        %338 = vmatpush1.msra.mxu0 %v322
        %339 = vmatprep.subr.mxu0 0.0
        %340 = vmatpush1.msra.mxu0 %v323
        %341 = vmatprep.subr.mxu0 0.0
        %342 = vmatpush1.msra.mxu0 %v324
        %343 = vmatprep.subr.mxu0 0.0
        %344 = vmatpush1.msra.mxu0 %v325
        %345 = vmatprep.subr.mxu0 0.0
        %346 = vmatpush1.msra.mxu0 0.0
        %347 = vmatprep.subr.mxu0 0.0
        %348 = vmatpush1.msra.mxu0 0.0
        %349 = vmatprep.subr.mxu0 0.0
        %350 = vmatpush1.msra.mxu0 0.0
        %351 = vmatprep.subr.mxu0 0.0
        %352 = vmatpush1.msra.mxu0 0.0
        %353 = vmatprep.subr.mxu0 0.0
        %354 = vmatpush1.msra.mxu0 0.0
        %355 = vmatprep.subr.mxu0 0.0
        %356 = vmatpush1.msra.mxu0 0.0
        %357 = vmatprep.subr.mxu0 0.0
        %358 = vmatpush1.msra.mxu0 0.0
        %359 = vmatprep.subr.mxu0 0.0
        %360 = vmatpush1.msra.mxu0 0.0
        %361 = vmatprep.subr.mxu0 0.0
        %362 = vmatpush1.msra.mxu0 0.0
        %363 = vmatprep.subr.mxu0 0.0
        %364 = vmatpush1.msra.mxu0 0.0
        %365 = vmatprep.subr.mxu0 0.0
        %366 = vmatpush1.msra.mxu0 0.0
        %367 = vmatprep.subr.mxu0 0.0
        %368 = vmatpush1.msra.mxu0 0.0
        %369 = vmatprep.subr.mxu0 0.0
        %370 = vmatpush1.msra.mxu0 0.0
        %371 = vmatprep.subr.mxu0 0.0
        %372 = vmatpush1.msra.mxu0 0.0
        %373 = vmatprep.subr.mxu0 0.0
        %374 = vmatpush1.msra.mxu0 0.0
        %375 = vmatprep.subr.mxu0 0.0
        %376 = vmatpush1.msra.mxu0 0.0
        %377 = vmatprep.subr.mxu0 0.0
        %378 = vmatpush1.msra.mxu0 0.0
        %379 = vmatprep.subr.mxu0 0.0
        %380 = vmatpush1.msra.mxu0 0.0
        %381 = vmatprep.subr.mxu0 0.0
        %382 = vmatpush1.msra.mxu0 0.0
        %383 = vmatprep.subr.mxu0 0.0
        %384 = vmatpush1.msra.mxu0 0.0
        %385 = vmatprep.subr.mxu0 0.0
        %386 = vmatpush1.msra.mxu0 0.0
        %387 = vmatprep.subr.mxu0 0.0
        %388 = vmatpush1.msra.mxu0 0.0
        %389 = vmatprep.subr.mxu0 0.0
        %390 = vmatpush1.msra.mxu0 0.0
        %391 = vmatprep.subr.mxu0 0.0
        %392 = vmatpush1.msra.mxu0 0.0
        %393 = vmatprep.subr.mxu0 0.0
        %394 = vmatpush1.msra.mxu0 0.0
        %395 = vmatprep.subr.mxu0 0.0
        %396 = vmatpush1.msra.mxu0 0.0
        %397 = vmatprep.subr.mxu0 0.0
        %398 = vmatpush1.msra.mxu0 0.0
        %399 = vmatprep.subr.mxu0 0.0
        %400 = vmatpush1.msra.mxu0 0.0
        %401 = vmatprep.mubr.f32.mxu0 0.0
        %402 = vmatmul.mubr.f32.gmra.mrb[0].mxu0 %v335
        %v403 = vpop.f32.mrb[0].mxu0
        %v404 = vadd.f32 %v331, %v403
        %v405 = vpop.f32.mrb[0].mxu0
        %406 = vdwg.mxu0
        %408 = vrot.lane.b32.xlu0 %v404, 96
        %v409 = vpop.permute.xlu0 %408
        %vm410 = vcmask 64512
        %v411 = vsel %vm410, %v404, 0
        %v413 = vsel %vm410, %v409, 0
        %415 = vmatprep.subr.mxu0 0.0
        %416 = vmatpush1.xpose.msra.mxu0 %v413
        %417 = vmatprep.subr.mxu0 0.0
        %418 = vmatpush1.xpose.msra.mxu0 0.0
        %419 = vmatprep.subr.mxu0 0.0
        %420 = vmatpush1.xpose.msra.mxu0 0.0
        %421 = vmatprep.subr.mxu0 0.0
        %422 = vmatpush1.xpose.msra.mxu0 0.0
        %423 = vmatprep.subr.mxu0 0.0
        %424 = vmatpush1.xpose.msra.mxu0 0.0
        %425 = vmatprep.subr.mxu0 0.0
        %426 = vmatpush1.xpose.msra.mxu0 0.0
        %427 = vmatprep.subr.mxu0 0.0
        %428 = vmatpush1.xpose.msra.mxu0 0.0
        %429 = vmatprep.subr.mxu0 0.0
        %430 = vmatpush1.xpose.msra.mxu0 0.0
        %431 = vmatprep.subr.mxu0 0.0
        %432 = vmatpush1.xpose.msra.mxu0 0.0
        %433 = vmatprep.subr.mxu0 0.0
        %434 = vmatpush1.xpose.msra.mxu0 0.0
        %435 = vmatprep.subr.mxu0 0.0
        %436 = vmatpush1.xpose.msra.mxu0 0.0
        %437 = vmatprep.subr.mxu0 0.0
        %438 = vmatpush1.xpose.msra.mxu0 0.0
        %439 = vmatprep.subr.mxu0 0.0
        %440 = vmatpush1.xpose.msra.mxu0 0.0
        %441 = vmatprep.subr.mxu0 0.0
        %442 = vmatpush1.xpose.msra.mxu0 0.0
        %443 = vmatprep.subr.mxu0 0.0
        %444 = vmatpush1.xpose.msra.mxu0 0.0
        %445 = vmatprep.subr.mxu0 0.0
        %446 = vmatpush1.xpose.msra.mxu0 0.0
        %447 = vmatprep.subr.mxu0 0.0
        %448 = vmatpush1.xpose.msra.mxu0 0.0
        %449 = vmatprep.subr.mxu0 0.0
        %450 = vmatpush1.xpose.msra.mxu0 0.0
        %451 = vmatprep.subr.mxu0 0.0
        %452 = vmatpush1.xpose.msra.mxu0 0.0
        %453 = vmatprep.subr.mxu0 0.0
        %454 = vmatpush1.xpose.msra.mxu0 0.0
        %455 = vmatprep.subr.mxu0 0.0
        %456 = vmatpush1.xpose.msra.mxu0 0.0
        %457 = vmatprep.subr.mxu0 0.0
        %458 = vmatpush1.xpose.msra.mxu0 0.0
        %459 = vmatprep.subr.mxu0 0.0
        %460 = vmatpush1.xpose.msra.mxu0 0.0
        %461 = vmatprep.subr.mxu0 0.0
        %462 = vmatpush1.xpose.msra.mxu0 0.0
        %463 = vmatprep.subr.mxu0 0.0
        %464 = vmatpush1.xpose.msra.mxu0 0.0
        %465 = vmatprep.subr.mxu0 0.0
        %466 = vmatpush1.xpose.msra.mxu0 0.0
        %467 = vmatprep.subr.mxu0 0.0
        %468 = vmatpush1.xpose.msra.mxu0 0.0
        %469 = vmatprep.subr.mxu0 0.0
        %470 = vmatpush1.xpose.msra.mxu0 0.0
        %471 = vmatprep.subr.mxu0 0.0
        %472 = vmatpush1.xpose.msra.mxu0 0.0
        %473 = vmatprep.subr.mxu0 0.0
        %474 = vmatpush1.xpose.msra.mxu0 0.0
        %475 = vmatprep.subr.mxu0 0.0
        %476 = vmatpush1.xpose.msra.mxu0 0.0
        %477 = vmatprep.subr.mxu0 0.0
        %478 = vmatpush1.xpose.msra.mxu0 0.0
        %479 = vmatprep.mubr.f32.mxu0 0.0
        %480 = vmatmul.mubr.f32.gmra.mrb[0].mxu0 %v411
        %v481 = vpop.f32.mrb[0].mxu0
        %v482 = vadd.f32 0.0, %v481
        %v483 = vpop.f32.mrb[0].mxu0
        %484 = vdwg.mxu0
        %v485 = vsel %vm410, %v482, -inf
        %486 = vmax.xlane.f32.xlu0 %v485
        %v487 = vpop.xlane.xlu0 %486
        %v488 = vsub.f32 %v482, %v487
        %v489 = vmul.f32 %v488, 1.442695
        %v490 = vpow.pop %v489
        %v491 = vsel %vm410, %v490, 0.0
        %492 = vadd.xlane.f32.xlu0 %v491
        %v493 = vpop.xlane.xlu0 %492
        %v494 = vrcp.pop %v493
        %v495 = vmul.f32 %v490, %v494
        %496 = vrot.lane.b32.xlu0 %v404, 64
        %v497 = vpop.permute.xlu0 %496
        %v500 = vsel %vm410, %v495, 0
        %502 = vmatprep.subr.mxu0 0.0
        %503 = vmatpush1.msra.mxu0 %v497
        %504 = vmatprep.subr.mxu0 0.0
        %505 = vmatpush1.msra.mxu0 0.0
        %506 = vmatprep.subr.mxu0 0.0
        %507 = vmatpush1.msra.mxu0 0.0
        %508 = vmatprep.subr.mxu0 0.0
        %509 = vmatpush1.msra.mxu0 0.0
        %510 = vmatprep.subr.mxu0 0.0
        %511 = vmatpush1.msra.mxu0 0.0
        %512 = vmatprep.subr.mxu0 0.0
        %513 = vmatpush1.msra.mxu0 0.0
        %514 = vmatprep.subr.mxu0 0.0
        %515 = vmatpush1.msra.mxu0 0.0
        %516 = vmatprep.subr.mxu0 0.0
        %517 = vmatpush1.msra.mxu0 0.0
        %518 = vmatprep.subr.mxu0 0.0
        %519 = vmatpush1.msra.mxu0 0.0
        %520 = vmatprep.subr.mxu0 0.0
        %521 = vmatpush1.msra.mxu0 0.0
        %522 = vmatprep.subr.mxu0 0.0
        %523 = vmatpush1.msra.mxu0 0.0
        %524 = vmatprep.subr.mxu0 0.0
        %525 = vmatpush1.msra.mxu0 0.0
        %526 = vmatprep.subr.mxu0 0.0
        %527 = vmatpush1.msra.mxu0 0.0
        %528 = vmatprep.subr.mxu0 0.0
        %529 = vmatpush1.msra.mxu0 0.0
        %530 = vmatprep.subr.mxu0 0.0
        %531 = vmatpush1.msra.mxu0 0.0
        %532 = vmatprep.subr.mxu0 0.0
        %533 = vmatpush1.msra.mxu0 0.0
        %534 = vmatprep.subr.mxu0 0.0
        %535 = vmatpush1.msra.mxu0 0.0
        %536 = vmatprep.subr.mxu0 0.0
        %537 = vmatpush1.msra.mxu0 0.0
        %538 = vmatprep.subr.mxu0 0.0
        %539 = vmatpush1.msra.mxu0 0.0
        %540 = vmatprep.subr.mxu0 0.0
        %541 = vmatpush1.msra.mxu0 0.0
        %542 = vmatprep.subr.mxu0 0.0
        %543 = vmatpush1.msra.mxu0 0.0
        %544 = vmatprep.subr.mxu0 0.0
        %545 = vmatpush1.msra.mxu0 0.0
        %546 = vmatprep.subr.mxu0 0.0
        %547 = vmatpush1.msra.mxu0 0.0
        %548 = vmatprep.subr.mxu0 0.0
        %549 = vmatpush1.msra.mxu0 0.0
        %550 = vmatprep.subr.mxu0 0.0
        %551 = vmatpush1.msra.mxu0 0.0
        %552 = vmatprep.subr.mxu0 0.0
        %553 = vmatpush1.msra.mxu0 0.0
        %554 = vmatprep.subr.mxu0 0.0
        %555 = vmatpush1.msra.mxu0 0.0
        %556 = vmatprep.subr.mxu0 0.0
        %557 = vmatpush1.msra.mxu0 0.0
        %558 = vmatprep.subr.mxu0 0.0
        %559 = vmatpush1.msra.mxu0 0.0
        %560 = vmatprep.subr.mxu0 0.0
        %561 = vmatpush1.msra.mxu0 0.0
        %562 = vmatprep.subr.mxu0 0.0
        %563 = vmatpush1.msra.mxu0 0.0
        %564 = vmatprep.subr.mxu0 0.0
        %565 = vmatpush1.msra.mxu0 0.0
        %566 = vmatprep.mubr.f32.mxu0 0.0
        %567 = vmatmul.mubr.f32.gmra.mrb[0].mxu0 %v500
        %v568 = vpop.f32.mrb[0].mxu0
        %v569 = vadd.f32 0.0, %v568
        %v570 = vpop.f32.mrb[0].mxu0
        %571 = vdwg.mxu0
        %572 = vst.msk [vmem:[#allocation2] sm:$0xff] %vm410, %v569
        %573 = vrot.lane.b32.xlu0 %v404, 120
        %v574 = vpop.permute.xlu0 %573
        %575 = vrot.lane.b32.xlu0 %v404, 88
        %v576 = vpop.permute.xlu0 %575
        %v577 = vsel %vm410, %v574, 0
        %v579 = vsel %vm410, %v576, 0
        %581 = vmatprep.subr.mxu0 0.0
        %582 = vmatpush1.xpose.msra.mxu0 %v579
        %583 = vmatprep.subr.mxu0 0.0
        %584 = vmatpush1.xpose.msra.mxu0 0.0
        %585 = vmatprep.subr.mxu0 0.0
        %586 = vmatpush1.xpose.msra.mxu0 0.0
        %587 = vmatprep.subr.mxu0 0.0
        %588 = vmatpush1.xpose.msra.mxu0 0.0
        %589 = vmatprep.subr.mxu0 0.0
        %590 = vmatpush1.xpose.msra.mxu0 0.0
        %591 = vmatprep.subr.mxu0 0.0
        %592 = vmatpush1.xpose.msra.mxu0 0.0
        %593 = vmatprep.subr.mxu0 0.0
        %594 = vmatpush1.xpose.msra.mxu0 0.0
        %595 = vmatprep.subr.mxu0 0.0
        %596 = vmatpush1.xpose.msra.mxu0 0.0
        %597 = vmatprep.subr.mxu0 0.0
        %598 = vmatpush1.xpose.msra.mxu0 0.0
        %599 = vmatprep.subr.mxu0 0.0
        %600 = vmatpush1.xpose.msra.mxu0 0.0
        %601 = vmatprep.subr.mxu0 0.0
        %602 = vmatpush1.xpose.msra.mxu0 0.0
        %603 = vmatprep.subr.mxu0 0.0
        %604 = vmatpush1.xpose.msra.mxu0 0.0
        %605 = vmatprep.subr.mxu0 0.0
        %606 = vmatpush1.xpose.msra.mxu0 0.0
        %607 = vmatprep.subr.mxu0 0.0
        %608 = vmatpush1.xpose.msra.mxu0 0.0
        %609 = vmatprep.subr.mxu0 0.0
        %610 = vmatpush1.xpose.msra.mxu0 0.0
        %611 = vmatprep.subr.mxu0 0.0
        %612 = vmatpush1.xpose.msra.mxu0 0.0
        %613 = vmatprep.subr.mxu0 0.0
        %614 = vmatpush1.xpose.msra.mxu0 0.0
        %615 = vmatprep.subr.mxu0 0.0
        %616 = vmatpush1.xpose.msra.mxu0 0.0
        %617 = vmatprep.subr.mxu0 0.0
        %618 = vmatpush1.xpose.msra.mxu0 0.0
        %619 = vmatprep.subr.mxu0 0.0
        %620 = vmatpush1.xpose.msra.mxu0 0.0
        %621 = vmatprep.subr.mxu0 0.0
        %622 = vmatpush1.xpose.msra.mxu0 0.0
        %623 = vmatprep.subr.mxu0 0.0
        %624 = vmatpush1.xpose.msra.mxu0 0.0
        %625 = vmatprep.subr.mxu0 0.0
        %626 = vmatpush1.xpose.msra.mxu0 0.0
        %627 = vmatprep.subr.mxu0 0.0
        %628 = vmatpush1.xpose.msra.mxu0 0.0
        %629 = vmatprep.subr.mxu0 0.0
        %630 = vmatpush1.xpose.msra.mxu0 0.0
        %631 = vmatprep.subr.mxu0 0.0
        %632 = vmatpush1.xpose.msra.mxu0 0.0
        %633 = vmatprep.subr.mxu0 0.0
        %634 = vmatpush1.xpose.msra.mxu0 0.0
        %635 = vmatprep.subr.mxu0 0.0
        %636 = vmatpush1.xpose.msra.mxu0 0.0
        %637 = vmatprep.subr.mxu0 0.0
        %638 = vmatpush1.xpose.msra.mxu0 0.0
        %639 = vmatprep.subr.mxu0 0.0
        %640 = vmatpush1.xpose.msra.mxu0 0.0
        %641 = vmatprep.subr.mxu0 0.0
        %642 = vmatpush1.xpose.msra.mxu0 0.0
        %643 = vmatprep.subr.mxu0 0.0
        %644 = vmatpush1.xpose.msra.mxu0 0.0
        %645 = vmatprep.mubr.f32.mxu0 0.0
        %646 = vmatmul.mubr.f32.gmra.mrb[0].mxu0 %v577
        %v647 = vpop.f32.mrb[0].mxu0
        %v648 = vadd.f32 0.0, %v647
        %v649 = vpop.f32.mrb[0].mxu0
        %650 = vdwg.mxu0
        %v651 = vsel %vm410, %v648, -inf
        %652 = vmax.xlane.f32.xlu0 %v651
        %v653 = vpop.xlane.xlu0 %652
        %v654 = vsub.f32 %v648, %v653
        %v655 = vmul.f32 %v654, 1.442695
        %v656 = vpow.pop %v655
        %v657 = vsel %vm410, %v656, 0.0
        %658 = vadd.xlane.f32.xlu0 %v657
        %v659 = vpop.xlane.xlu0 %658
        %v660 = vrcp.pop %v659
        %v661 = vmul.f32 %v656, %v660
        %662 = vrot.lane.b32.xlu0 %v404, 56
        %v663 = vpop.permute.xlu0 %662
        %v666 = vsel %vm410, %v661, 0
        %668 = vmatprep.subr.mxu0 0.0
        %669 = vmatpush1.msra.mxu0 %v663
        %670 = vmatprep.subr.mxu0 0.0
        %671 = vmatpush1.msra.mxu0 0.0
        %672 = vmatprep.subr.mxu0 0.0
        %673 = vmatpush1.msra.mxu0 0.0
        %674 = vmatprep.subr.mxu0 0.0
        %675 = vmatpush1.msra.mxu0 0.0
        %676 = vmatprep.subr.mxu0 0.0
        %677 = vmatpush1.msra.mxu0 0.0
        %678 = vmatprep.subr.mxu0 0.0
        %679 = vmatpush1.msra.mxu0 0.0
        %680 = vmatprep.subr.mxu0 0.0
        %681 = vmatpush1.msra.mxu0 0.0
        %682 = vmatprep.subr.mxu0 0.0
        %683 = vmatpush1.msra.mxu0 0.0
        %684 = vmatprep.subr.mxu0 0.0
        %685 = vmatpush1.msra.mxu0 0.0
        %686 = vmatprep.subr.mxu0 0.0
        %687 = vmatpush1.msra.mxu0 0.0
        %688 = vmatprep.subr.mxu0 0.0
        %689 = vmatpush1.msra.mxu0 0.0
        %690 = vmatprep.subr.mxu0 0.0
        %691 = vmatpush1.msra.mxu0 0.0
        %692 = vmatprep.subr.mxu0 0.0
        %693 = vmatpush1.msra.mxu0 0.0
        %694 = vmatprep.subr.mxu0 0.0
        %695 = vmatpush1.msra.mxu0 0.0
        %696 = vmatprep.subr.mxu0 0.0
        %697 = vmatpush1.msra.mxu0 0.0
        %698 = vmatprep.subr.mxu0 0.0
        %699 = vmatpush1.msra.mxu0 0.0
        %700 = vmatprep.subr.mxu0 0.0
        %701 = vmatpush1.msra.mxu0 0.0
        %702 = vmatprep.subr.mxu0 0.0
        %703 = vmatpush1.msra.mxu0 0.0
        %704 = vmatprep.subr.mxu0 0.0
        %705 = vmatpush1.msra.mxu0 0.0
        %706 = vmatprep.subr.mxu0 0.0
        %707 = vmatpush1.msra.mxu0 0.0
        %708 = vmatprep.subr.mxu0 0.0
        %709 = vmatpush1.msra.mxu0 0.0
        %710 = vmatprep.subr.mxu0 0.0
        %711 = vmatpush1.msra.mxu0 0.0
        %712 = vmatprep.subr.mxu0 0.0
        %713 = vmatpush1.msra.mxu0 0.0
        %714 = vmatprep.subr.mxu0 0.0
        %715 = vmatpush1.msra.mxu0 0.0
        %716 = vmatprep.subr.mxu0 0.0
        %717 = vmatpush1.msra.mxu0 0.0
        %718 = vmatprep.subr.mxu0 0.0
        %719 = vmatpush1.msra.mxu0 0.0
        %720 = vmatprep.subr.mxu0 0.0
        %721 = vmatpush1.msra.mxu0 0.0
        %722 = vmatprep.subr.mxu0 0.0
        %723 = vmatpush1.msra.mxu0 0.0
        %724 = vmatprep.subr.mxu0 0.0
        %725 = vmatpush1.msra.mxu0 0.0
        %726 = vmatprep.subr.mxu0 0.0
        %727 = vmatpush1.msra.mxu0 0.0
        %728 = vmatprep.subr.mxu0 0.0
        %729 = vmatpush1.msra.mxu0 0.0
        %730 = vmatprep.subr.mxu0 0.0
        %731 = vmatpush1.msra.mxu0 0.0
        %732 = vmatprep.mubr.f32.mxu0 0.0
        %733 = vmatmul.mubr.f32.gmra.mrb[0].mxu0 %v666
        %v734 = vpop.f32.mrb[0].mxu0
        %v735 = vadd.f32 0.0, %v734
        %v736 = vpop.f32.mrb[0].mxu0
        %737 = vdwg.mxu0
        %739 = vrot.lane.b32.xlu0 %v735, 8
        %v740 = vpop.permute.xlu0 %739
        %vm742 = vcmask 130112
        %743 = vst.msk [vmem:[#allocation2] sm:$0xff] %vm742, %v740
        %744 = vrot.lane.b32.xlu0 %v404, 112
        %v745 = vpop.permute.xlu0 %744
        %746 = vrot.lane.b32.xlu0 %v404, 80
        %v747 = vpop.permute.xlu0 %746
        %v748 = vsel %vm410, %v745, 0
        %v750 = vsel %vm410, %v747, 0
        %752 = vmatprep.subr.mxu0 0.0
        %753 = vmatpush1.xpose.msra.mxu0 %v750
        %754 = vmatprep.subr.mxu0 0.0
        %755 = vmatpush1.xpose.msra.mxu0 0.0
        %756 = vmatprep.subr.mxu0 0.0
        %757 = vmatpush1.xpose.msra.mxu0 0.0
        %758 = vmatprep.subr.mxu0 0.0
        %759 = vmatpush1.xpose.msra.mxu0 0.0
        %760 = vmatprep.subr.mxu0 0.0
        %761 = vmatpush1.xpose.msra.mxu0 0.0
        %762 = vmatprep.subr.mxu0 0.0
        %763 = vmatpush1.xpose.msra.mxu0 0.0
        %764 = vmatprep.subr.mxu0 0.0
        %765 = vmatpush1.xpose.msra.mxu0 0.0
        %766 = vmatprep.subr.mxu0 0.0
        %767 = vmatpush1.xpose.msra.mxu0 0.0
        %768 = vmatprep.subr.mxu0 0.0
        %769 = vmatpush1.xpose.msra.mxu0 0.0
        %770 = vmatprep.subr.mxu0 0.0
        %771 = vmatpush1.xpose.msra.mxu0 0.0
        %772 = vmatprep.subr.mxu0 0.0
        %773 = vmatpush1.xpose.msra.mxu0 0.0
        %774 = vmatprep.subr.mxu0 0.0
        %775 = vmatpush1.xpose.msra.mxu0 0.0
        %776 = vmatprep.subr.mxu0 0.0
        %777 = vmatpush1.xpose.msra.mxu0 0.0
        %778 = vmatprep.subr.mxu0 0.0
        %779 = vmatpush1.xpose.msra.mxu0 0.0
        %780 = vmatprep.subr.mxu0 0.0
        %781 = vmatpush1.xpose.msra.mxu0 0.0
        %782 = vmatprep.subr.mxu0 0.0
        %783 = vmatpush1.xpose.msra.mxu0 0.0
        %784 = vmatprep.subr.mxu0 0.0
        %785 = vmatpush1.xpose.msra.mxu0 0.0
        %786 = vmatprep.subr.mxu0 0.0
        %787 = vmatpush1.xpose.msra.mxu0 0.0
        %788 = vmatprep.subr.mxu0 0.0
        %789 = vmatpush1.xpose.msra.mxu0 0.0
        %790 = vmatprep.subr.mxu0 0.0
        %791 = vmatpush1.xpose.msra.mxu0 0.0
        %792 = vmatprep.subr.mxu0 0.0
        %793 = vmatpush1.xpose.msra.mxu0 0.0
        %794 = vmatprep.subr.mxu0 0.0
        %795 = vmatpush1.xpose.msra.mxu0 0.0
        %796 = vmatprep.subr.mxu0 0.0
        %797 = vmatpush1.xpose.msra.mxu0 0.0
        %798 = vmatprep.subr.mxu0 0.0
        %799 = vmatpush1.xpose.msra.mxu0 0.0
        %800 = vmatprep.subr.mxu0 0.0
        %801 = vmatpush1.xpose.msra.mxu0 0.0
        %802 = vmatprep.subr.mxu0 0.0
        %803 = vmatpush1.xpose.msra.mxu0 0.0
        %804 = vmatprep.subr.mxu0 0.0
        %805 = vmatpush1.xpose.msra.mxu0 0.0
        %806 = vmatprep.subr.mxu0 0.0
        %807 = vmatpush1.xpose.msra.mxu0 0.0
        %808 = vmatprep.subr.mxu0 0.0
        %809 = vmatpush1.xpose.msra.mxu0 0.0
        %810 = vmatprep.subr.mxu0 0.0
        %811 = vmatpush1.xpose.msra.mxu0 0.0
        %812 = vmatprep.subr.mxu0 0.0
        %813 = vmatpush1.xpose.msra.mxu0 0.0
        %814 = vmatprep.subr.mxu0 0.0
        %815 = vmatpush1.xpose.msra.mxu0 0.0
        %816 = vmatprep.mubr.f32.mxu0 0.0
        %817 = vmatmul.mubr.f32.gmra.mrb[0].mxu0 %v748
        %v818 = vpop.f32.mrb[0].mxu0
        %v819 = vadd.f32 0.0, %v818
        %v820 = vpop.f32.mrb[0].mxu0
        %821 = vdwg.mxu0
        %v822 = vsel %vm410, %v819, -inf
        %823 = vmax.xlane.f32.xlu0 %v822
        %v824 = vpop.xlane.xlu0 %823
        %v825 = vsub.f32 %v819, %v824
        %v826 = vmul.f32 %v825, 1.442695
        %v827 = vpow.pop %v826
        %v828 = vsel %vm410, %v827, 0.0
        %829 = vadd.xlane.f32.xlu0 %v828
        %v830 = vpop.xlane.xlu0 %829
        %v831 = vrcp.pop %v830
        %v832 = vmul.f32 %v827, %v831
        %833 = vrot.lane.b32.xlu0 %v404, 48
        %v834 = vpop.permute.xlu0 %833
        %v837 = vsel %vm410, %v832, 0
        %839 = vmatprep.subr.mxu0 0.0
        %840 = vmatpush1.msra.mxu0 %v834
        %841 = vmatprep.subr.mxu0 0.0
        %842 = vmatpush1.msra.mxu0 0.0
        %843 = vmatprep.subr.mxu0 0.0
        %844 = vmatpush1.msra.mxu0 0.0
        %845 = vmatprep.subr.mxu0 0.0
        %846 = vmatpush1.msra.mxu0 0.0
        %847 = vmatprep.subr.mxu0 0.0
        %848 = vmatpush1.msra.mxu0 0.0
        %849 = vmatprep.subr.mxu0 0.0
        %850 = vmatpush1.msra.mxu0 0.0
        %851 = vmatprep.subr.mxu0 0.0
        %852 = vmatpush1.msra.mxu0 0.0
        %853 = vmatprep.subr.mxu0 0.0
        %854 = vmatpush1.msra.mxu0 0.0
        %855 = vmatprep.subr.mxu0 0.0
        %856 = vmatpush1.msra.mxu0 0.0
        %857 = vmatprep.subr.mxu0 0.0
        %858 = vmatpush1.msra.mxu0 0.0
        %859 = vmatprep.subr.mxu0 0.0
        %860 = vmatpush1.msra.mxu0 0.0
        %861 = vmatprep.subr.mxu0 0.0
        %862 = vmatpush1.msra.mxu0 0.0
        %863 = vmatprep.subr.mxu0 0.0
        %864 = vmatpush1.msra.mxu0 0.0
        %865 = vmatprep.subr.mxu0 0.0
        %866 = vmatpush1.msra.mxu0 0.0
        %867 = vmatprep.subr.mxu0 0.0
        %868 = vmatpush1.msra.mxu0 0.0
        %869 = vmatprep.subr.mxu0 0.0
        %870 = vmatpush1.msra.mxu0 0.0
        %871 = vmatprep.subr.mxu0 0.0
        %872 = vmatpush1.msra.mxu0 0.0
        %873 = vmatprep.subr.mxu0 0.0
        %874 = vmatpush1.msra.mxu0 0.0
        %875 = vmatprep.subr.mxu0 0.0
        %876 = vmatpush1.msra.mxu0 0.0
        %877 = vmatprep.subr.mxu0 0.0
        %878 = vmatpush1.msra.mxu0 0.0
        %879 = vmatprep.subr.mxu0 0.0
        %880 = vmatpush1.msra.mxu0 0.0
        %881 = vmatprep.subr.mxu0 0.0
        %882 = vmatpush1.msra.mxu0 0.0
        %883 = vmatprep.subr.mxu0 0.0
        %884 = vmatpush1.msra.mxu0 0.0
        %885 = vmatprep.subr.mxu0 0.0
        %886 = vmatpush1.msra.mxu0 0.0
        %887 = vmatprep.subr.mxu0 0.0
        %888 = vmatpush1.msra.mxu0 0.0
        %889 = vmatprep.subr.mxu0 0.0
        %890 = vmatpush1.msra.mxu0 0.0
        %891 = vmatprep.subr.mxu0 0.0
        %892 = vmatpush1.msra.mxu0 0.0
        %893 = vmatprep.subr.mxu0 0.0
        %894 = vmatpush1.msra.mxu0 0.0
        %895 = vmatprep.subr.mxu0 0.0
        %896 = vmatpush1.msra.mxu0 0.0
        %897 = vmatprep.subr.mxu0 0.0
        %898 = vmatpush1.msra.mxu0 0.0
        %899 = vmatprep.subr.mxu0 0.0
        %900 = vmatpush1.msra.mxu0 0.0
        %901 = vmatprep.subr.mxu0 0.0
        %902 = vmatpush1.msra.mxu0 0.0
        %903 = vmatprep.mubr.f32.mxu0 0.0
        %904 = vmatmul.mubr.f32.gmra.mrb[0].mxu0 %v837
        %v905 = vpop.f32.mrb[0].mxu0
        %v906 = vadd.f32 0.0, %v905
        %v907 = vpop.f32.mrb[0].mxu0
        %908 = vdwg.mxu0
        %910 = vrot.lane.b32.xlu0 %v906, 16
        %v911 = vpop.permute.xlu0 %910
        %vm913 = vcmask 195712
        %914 = vst.msk [vmem:[#allocation2] sm:$0xff] %vm913, %v911
        %915 = vrot.lane.b32.xlu0 %v404, 104
        %v916 = vpop.permute.xlu0 %915
        %917 = vrot.lane.b32.xlu0 %v404, 72
        %v918 = vpop.permute.xlu0 %917
        %v919 = vsel %vm410, %v916, 0
        %v921 = vsel %vm410, %v918, 0
        %923 = vmatprep.subr.mxu0 0.0
        %924 = vmatpush1.xpose.msra.mxu0 %v921
        %925 = vmatprep.subr.mxu0 0.0
        %926 = vmatpush1.xpose.msra.mxu0 0.0
        %927 = vmatprep.subr.mxu0 0.0
        %928 = vmatpush1.xpose.msra.mxu0 0.0
        %929 = vmatprep.subr.mxu0 0.0
        %930 = vmatpush1.xpose.msra.mxu0 0.0
        %931 = vmatprep.subr.mxu0 0.0
        %932 = vmatpush1.xpose.msra.mxu0 0.0
        %933 = vmatprep.subr.mxu0 0.0
        %934 = vmatpush1.xpose.msra.mxu0 0.0
        %935 = vmatprep.subr.mxu0 0.0
        %936 = vmatpush1.xpose.msra.mxu0 0.0
        %937 = vmatprep.subr.mxu0 0.0
        %938 = vmatpush1.xpose.msra.mxu0 0.0
        %939 = vmatprep.subr.mxu0 0.0
        %940 = vmatpush1.xpose.msra.mxu0 0.0
        %941 = vmatprep.subr.mxu0 0.0
        %942 = vmatpush1.xpose.msra.mxu0 0.0
        %943 = vmatprep.subr.mxu0 0.0
        %944 = vmatpush1.xpose.msra.mxu0 0.0
        %945 = vmatprep.subr.mxu0 0.0
        %946 = vmatpush1.xpose.msra.mxu0 0.0
        %947 = vmatprep.subr.mxu0 0.0
        %948 = vmatpush1.xpose.msra.mxu0 0.0
        %949 = vmatprep.subr.mxu0 0.0
        %950 = vmatpush1.xpose.msra.mxu0 0.0
        %951 = vmatprep.subr.mxu0 0.0
        %952 = vmatpush1.xpose.msra.mxu0 0.0
        %953 = vmatprep.subr.mxu0 0.0
        %954 = vmatpush1.xpose.msra.mxu0 0.0
        %955 = vmatprep.subr.mxu0 0.0
        %956 = vmatpush1.xpose.msra.mxu0 0.0
        %957 = vmatprep.subr.mxu0 0.0
        %958 = vmatpush1.xpose.msra.mxu0 0.0
        %959 = vmatprep.subr.mxu0 0.0
        %960 = vmatpush1.xpose.msra.mxu0 0.0
        %961 = vmatprep.subr.mxu0 0.0
        %962 = vmatpush1.xpose.msra.mxu0 0.0
        %963 = vmatprep.subr.mxu0 0.0
        %964 = vmatpush1.xpose.msra.mxu0 0.0
        %965 = vmatprep.subr.mxu0 0.0
        %966 = vmatpush1.xpose.msra.mxu0 0.0
        %967 = vmatprep.subr.mxu0 0.0
        %968 = vmatpush1.xpose.msra.mxu0 0.0
        %969 = vmatprep.subr.mxu0 0.0
        %970 = vmatpush1.xpose.msra.mxu0 0.0
        %971 = vmatprep.subr.mxu0 0.0
        %972 = vmatpush1.xpose.msra.mxu0 0.0
        %973 = vmatprep.subr.mxu0 0.0
        %974 = vmatpush1.xpose.msra.mxu0 0.0
        %975 = vmatprep.subr.mxu0 0.0
        %976 = vmatpush1.xpose.msra.mxu0 0.0
        %977 = vmatprep.subr.mxu0 0.0
        %978 = vmatpush1.xpose.msra.mxu0 0.0
        %979 = vmatprep.subr.mxu0 0.0
        %980 = vmatpush1.xpose.msra.mxu0 0.0
        %981 = vmatprep.subr.mxu0 0.0
        %982 = vmatpush1.xpose.msra.mxu0 0.0
        %983 = vmatprep.subr.mxu0 0.0
        %984 = vmatpush1.xpose.msra.mxu0 0.0
        %985 = vmatprep.subr.mxu0 0.0
        %986 = vmatpush1.xpose.msra.mxu0 0.0
        %987 = vmatprep.mubr.f32.mxu0 0.0
        %988 = vmatmul.mubr.f32.gmra.mrb[0].mxu0 %v919
        %v989 = vpop.f32.mrb[0].mxu0
        %v990 = vadd.f32 0.0, %v989
        %v991 = vpop.f32.mrb[0].mxu0
        %992 = vdwg.mxu0
        %v993 = vsel %vm410, %v990, -inf
        %994 = vmax.xlane.f32.xlu0 %v993
        %v995 = vpop.xlane.xlu0 %994
        %v996 = vsub.f32 %v990, %v995
        %v997 = vmul.f32 %v996, 1.442695
        %v998 = vpow.pop %v997
        %v999 = vsel %vm410, %v998, 0.0
        %1000 = vadd.xlane.f32.xlu0 %v999
        %v1001 = vpop.xlane.xlu0 %1000
        %v1002 = vrcp.pop %v1001
        %v1003 = vmul.f32 %v998, %v1002
        %1004 = vrot.lane.b32.xlu0 %v404, 40
        %v1005 = vpop.permute.xlu0 %1004
        %v1008 = vsel %vm410, %v1003, 0
        %1010 = vmatprep.subr.mxu0 0.0
        %1011 = vmatpush1.msra.mxu0 %v1005
        %1012 = vmatprep.subr.mxu0 0.0
        %1013 = vmatpush1.msra.mxu0 0.0
        %1014 = vmatprep.subr.mxu0 0.0
        %1015 = vmatpush1.msra.mxu0 0.0
        %1016 = vmatprep.subr.mxu0 0.0
        %1017 = vmatpush1.msra.mxu0 0.0
        %1018 = vmatprep.subr.mxu0 0.0
        %1019 = vmatpush1.msra.mxu0 0.0
        %1020 = vmatprep.subr.mxu0 0.0
        %1021 = vmatpush1.msra.mxu0 0.0
        %1022 = vmatprep.subr.mxu0 0.0
        %1023 = vmatpush1.msra.mxu0 0.0
        %1024 = vmatprep.subr.mxu0 0.0
        %1025 = vmatpush1.msra.mxu0 0.0
        %1026 = vmatprep.subr.mxu0 0.0
        %1027 = vmatpush1.msra.mxu0 0.0
        %1028 = vmatprep.subr.mxu0 0.0
        %1029 = vmatpush1.msra.mxu0 0.0
        %1030 = vmatprep.subr.mxu0 0.0
        %1031 = vmatpush1.msra.mxu0 0.0
        %1032 = vmatprep.subr.mxu0 0.0
        %1033 = vmatpush1.msra.mxu0 0.0
        %1034 = vmatprep.subr.mxu0 0.0
        %1035 = vmatpush1.msra.mxu0 0.0
        %1036 = vmatprep.subr.mxu0 0.0
        %1037 = vmatpush1.msra.mxu0 0.0
        %1038 = vmatprep.subr.mxu0 0.0
        %1039 = vmatpush1.msra.mxu0 0.0
        %1040 = vmatprep.subr.mxu0 0.0
        %1041 = vmatpush1.msra.mxu0 0.0
        %1042 = vmatprep.subr.mxu0 0.0
        %1043 = vmatpush1.msra.mxu0 0.0
        %1044 = vmatprep.subr.mxu0 0.0
        %1045 = vmatpush1.msra.mxu0 0.0
        %1046 = vmatprep.subr.mxu0 0.0
        %1047 = vmatpush1.msra.mxu0 0.0
        %1048 = vmatprep.subr.mxu0 0.0
        %1049 = vmatpush1.msra.mxu0 0.0
        %1050 = vmatprep.subr.mxu0 0.0
        %1051 = vmatpush1.msra.mxu0 0.0
        %1052 = vmatprep.subr.mxu0 0.0
        %1053 = vmatpush1.msra.mxu0 0.0
        %1054 = vmatprep.subr.mxu0 0.0
        %1055 = vmatpush1.msra.mxu0 0.0
        %1056 = vmatprep.subr.mxu0 0.0
        %1057 = vmatpush1.msra.mxu0 0.0
        %1058 = vmatprep.subr.mxu0 0.0
        %1059 = vmatpush1.msra.mxu0 0.0
        %1060 = vmatprep.subr.mxu0 0.0
        %1061 = vmatpush1.msra.mxu0 0.0
        %1062 = vmatprep.subr.mxu0 0.0
        %1063 = vmatpush1.msra.mxu0 0.0
        %1064 = vmatprep.subr.mxu0 0.0
        %1065 = vmatpush1.msra.mxu0 0.0
        %1066 = vmatprep.subr.mxu0 0.0
        %1067 = vmatpush1.msra.mxu0 0.0
        %1068 = vmatprep.subr.mxu0 0.0
        %1069 = vmatpush1.msra.mxu0 0.0
        %1070 = vmatprep.subr.mxu0 0.0
        %1071 = vmatpush1.msra.mxu0 0.0
        %1072 = vmatprep.subr.mxu0 0.0
        %1073 = vmatpush1.msra.mxu0 0.0
        %1074 = vmatprep.mubr.f32.mxu0 0.0
        %1075 = vmatmul.mubr.f32.gmra.mrb[0].mxu0 %v1008
        %v1076 = vpop.f32.mrb[0].mxu0
        %v1077 = vadd.f32 0.0, %v1076
        %v1078 = vpop.f32.mrb[0].mxu0
        %1079 = vdwg.mxu0
        %1081 = vrot.lane.b32.xlu0 %v1077, 24
        %v1082 = vpop.permute.xlu0 %1081
        %vm1084 = vcmask 261312
        %1085 = vst.msk [vmem:[#allocation2] sm:$0xff] %vm1084, %v1082
        %v1086 = vld [vmem:[#allocation2] sm:$0xff]
        %v1087 = vld [vmem:[%s3] sm:$0xff]
        %v1088 = vld [vmem:[%s3 + $0x8] sm:$0xff]
        %v1089 = vld [vmem:[%s3 + $0x10] sm:$0xff]
        %v1090 = vld [vmem:[%s3 + $0x18] sm:$0xff]
        %v1092 = vsel %vm333, %v1086, 0
        %1094 = vmatprep.subr.mxu0 0.0
        %1095 = vmatpush1.msra.mxu0 %v1087
        %1096 = vmatprep.subr.mxu0 0.0
        %1097 = vmatpush1.msra.mxu0 %v1088
        %1098 = vmatprep.subr.mxu0 0.0
        %1099 = vmatpush1.msra.mxu0 %v1089
        %1100 = vmatprep.subr.mxu0 0.0
        %1101 = vmatpush1.msra.mxu0 %v1090
        %1102 = vmatprep.subr.mxu0 0.0
        %1103 = vmatpush1.msra.mxu0 0.0
        %1104 = vmatprep.subr.mxu0 0.0
        %1105 = vmatpush1.msra.mxu0 0.0
        %1106 = vmatprep.subr.mxu0 0.0
        %1107 = vmatpush1.msra.mxu0 0.0
        %1108 = vmatprep.subr.mxu0 0.0
        %1109 = vmatpush1.msra.mxu0 0.0
        %1110 = vmatprep.subr.mxu0 0.0
        %1111 = vmatpush1.msra.mxu0 0.0
        %1112 = vmatprep.subr.mxu0 0.0
        %1113 = vmatpush1.msra.mxu0 0.0
        %1114 = vmatprep.subr.mxu0 0.0
        %1115 = vmatpush1.msra.mxu0 0.0
        %1116 = vmatprep.subr.mxu0 0.0
        %1117 = vmatpush1.msra.mxu0 0.0
        %1118 = vmatprep.subr.mxu0 0.0
        %1119 = vmatpush1.msra.mxu0 0.0
        %1120 = vmatprep.subr.mxu0 0.0
        %1121 = vmatpush1.msra.mxu0 0.0
        %1122 = vmatprep.subr.mxu0 0.0
        %1123 = vmatpush1.msra.mxu0 0.0
        %1124 = vmatprep.subr.mxu0 0.0
        %1125 = vmatpush1.msra.mxu0 0.0
        %1126 = vmatprep.subr.mxu0 0.0
        %1127 = vmatpush1.msra.mxu0 0.0
        %1128 = vmatprep.subr.mxu0 0.0
        %1129 = vmatpush1.msra.mxu0 0.0
        %1130 = vmatprep.subr.mxu0 0.0
        %1131 = vmatpush1.msra.mxu0 0.0
        %1132 = vmatprep.subr.mxu0 0.0
        %1133 = vmatpush1.msra.mxu0 0.0
        %1134 = vmatprep.subr.mxu0 0.0
        %1135 = vmatpush1.msra.mxu0 0.0
        %1136 = vmatprep.subr.mxu0 0.0
        %1137 = vmatpush1.msra.mxu0 0.0
        %1138 = vmatprep.subr.mxu0 0.0
        %1139 = vmatpush1.msra.mxu0 0.0
        %1140 = vmatprep.subr.mxu0 0.0
        %1141 = vmatpush1.msra.mxu0 0.0
        %1142 = vmatprep.subr.mxu0 0.0
        %1143 = vmatpush1.msra.mxu0 0.0
        %1144 = vmatprep.subr.mxu0 0.0
        %1145 = vmatpush1.msra.mxu0 0.0
        %1146 = vmatprep.subr.mxu0 0.0
        %1147 = vmatpush1.msra.mxu0 0.0
        %1148 = vmatprep.subr.mxu0 0.0
        %1149 = vmatpush1.msra.mxu0 0.0
        %1150 = vmatprep.subr.mxu0 0.0
        %1151 = vmatpush1.msra.mxu0 0.0
        %1152 = vmatprep.subr.mxu0 0.0
        %1153 = vmatpush1.msra.mxu0 0.0
        %1154 = vmatprep.subr.mxu0 0.0
        %1155 = vmatpush1.msra.mxu0 0.0
        %1156 = vmatprep.subr.mxu0 0.0
        %1157 = vmatpush1.msra.mxu0 0.0
        %1158 = vmatprep.mubr.f32.mxu0 0.0
        %1159 = vmatmul.mubr.f32.gmra.mrb[0].mxu0 %v1092
        %v1160 = vpop.f32.mrb[0].mxu0
        %v1161 = vadd.f32 0.0, %v1160
        %v1162 = vpop.f32.mrb[0].mxu0
        %1163 = vdwg.mxu0
        %v1164 = vld [vmem:[%s7] sm:$0x3f]
        %v1165 = vadd.f32 %v321, %v1161
        %v1166 = vlaneseq
        %v1167 = vshrl.u32 %v1166, 7
        %v1168 = vsub.s32 0, %v1167
        %v1169 = vrot.slane %v1164, %v1168
        %v1170 = vadd.f32 %v1165, %v1169
        %v1171 = vsel %vm333, %v1170, 0.0
        %1172 = vadd.xlane.f32.xlu0 %v1171
        %v1173 = vpop.xlane.xlu0 %1172
        %v1174 = vrcp.pop 32.0
        %v1175 = vmul.f32 %v1173, %v1174
        %v1176 = vmul.f32 %v1170, %v1170
        %v1177 = vsel %vm333, %v1176, 0.0
        %1178 = vadd.xlane.f32.xlu0 %v1177
        %v1179 = vpop.xlane.xlu0 %1178
        %v1180 = vmul.f32 %v1179, %v1174
        %v1181 = vmul.f32 %v1175, %v1175
        %v1182 = vsub.f32 %v1180, %v1181
        %v1183 = vmax.f32 %v1182, 0.0
        %v1184 = vsub.f32 %v1170, %v1175
        %v1185 = vadd.f32 %v1183, 1e-05
        %v1186 = vrsqrt.pop %v1185
        %v1187 = vmul.f32 %v1184, %v1186
        %v1188 = vlaneseq
        %v1189 = vshrl.u32 %v1188, 7
        %v1190 = vsub.s32 2, %v1189
        %v1191 = vrot.slane %v1164, %v1190
        %v1192 = vmul.f32 %v1187, %v1191
        %v1193 = vlaneseq
        %v1194 = vshrl.u32 %v1193, 7
        %v1195 = vsub.s32 3, %v1194
        %v1196 = vrot.slane %v1164, %v1195
        %v1197 = vadd.f32 %v1192, %v1196
        %v1198 = vld [vmem:[%s4] sm:$0xff]
        %v1199 = vld [vmem:[%s4 + $0x8] sm:$0xff]
        %v1200 = vld [vmem:[%s4 + $0x10] sm:$0xff]
        %v1201 = vld [vmem:[%s4 + $0x18] sm:$0xff]
        %v1202 = vld [vmem:[%s5] sm:$0x1]
        %v1204 = vlaneseq
        %v1205 = vshrl.u32 %v1204, 7
        %v1206 = vsub.s32 0, %v1205
        %v1207 = vrot.slane %v1202, %v1206
        %v1210 = vsel %vm333, %v1197, 0
        %1212 = vmatprep.subr.mxu0 0.0
        %1213 = vmatpush1.msra.mxu0 %v1198
        %1214 = vmatprep.subr.mxu0 0.0
        %1215 = vmatpush1.msra.mxu0 %v1199
        %1216 = vmatprep.subr.mxu0 0.0
        %1217 = vmatpush1.msra.mxu0 %v1200
        %1218 = vmatprep.subr.mxu0 0.0
        %1219 = vmatpush1.msra.mxu0 %v1201
        %1220 = vmatprep.subr.mxu0 0.0
        %1221 = vmatpush1.msra.mxu0 0.0
        %1222 = vmatprep.subr.mxu0 0.0
        %1223 = vmatpush1.msra.mxu0 0.0
        %1224 = vmatprep.subr.mxu0 0.0
        %1225 = vmatpush1.msra.mxu0 0.0
        %1226 = vmatprep.subr.mxu0 0.0
        %1227 = vmatpush1.msra.mxu0 0.0
        %1228 = vmatprep.subr.mxu0 0.0
        %1229 = vmatpush1.msra.mxu0 0.0
        %1230 = vmatprep.subr.mxu0 0.0
        %1231 = vmatpush1.msra.mxu0 0.0
        %1232 = vmatprep.subr.mxu0 0.0
        %1233 = vmatpush1.msra.mxu0 0.0
        %1234 = vmatprep.subr.mxu0 0.0
        %1235 = vmatpush1.msra.mxu0 0.0
        %1236 = vmatprep.subr.mxu0 0.0
        %1237 = vmatpush1.msra.mxu0 0.0
        %1238 = vmatprep.subr.mxu0 0.0
        %1239 = vmatpush1.msra.mxu0 0.0
        %1240 = vmatprep.subr.mxu0 0.0
        %1241 = vmatpush1.msra.mxu0 0.0
        %1242 = vmatprep.subr.mxu0 0.0
        %1243 = vmatpush1.msra.mxu0 0.0
        %1244 = vmatprep.subr.mxu0 0.0
        %1245 = vmatpush1.msra.mxu0 0.0
        %1246 = vmatprep.subr.mxu0 0.0
        %1247 = vmatpush1.msra.mxu0 0.0
        %1248 = vmatprep.subr.mxu0 0.0
        %1249 = vmatpush1.msra.mxu0 0.0
        %1250 = vmatprep.subr.mxu0 0.0
        %1251 = vmatpush1.msra.mxu0 0.0
        %1252 = vmatprep.subr.mxu0 0.0
        %1253 = vmatpush1.msra.mxu0 0.0
        %1254 = vmatprep.subr.mxu0 0.0
        %1255 = vmatpush1.msra.mxu0 0.0
        %1256 = vmatprep.subr.mxu0 0.0
        %1257 = vmatpush1.msra.mxu0 0.0
        %1258 = vmatprep.subr.mxu0 0.0
        %1259 = vmatpush1.msra.mxu0 0.0
        %1260 = vmatprep.subr.mxu0 0.0
        %1261 = vmatpush1.msra.mxu0 0.0
        %1262 = vmatprep.subr.mxu0 0.0
        %1263 = vmatpush1.msra.mxu0 0.0
        %1264 = vmatprep.subr.mxu0 0.0
        %1265 = vmatpush1.msra.mxu0 0.0
        %1266 = vmatprep.subr.mxu0 0.0
        %1267 = vmatpush1.msra.mxu0 0.0
        %1268 = vmatprep.subr.mxu0 0.0
        %1269 = vmatpush1.msra.mxu0 0.0
        %1270 = vmatprep.subr.mxu0 0.0
        %1271 = vmatpush1.msra.mxu0 0.0
        %1272 = vmatprep.subr.mxu0 0.0
        %1273 = vmatpush1.msra.mxu0 0.0
        %1274 = vmatprep.subr.mxu0 0.0
        %1275 = vmatpush1.msra.mxu0 0.0
        %1276 = vmatprep.mubr.f32.mxu0 0.0
        %1277 = vmatmul.mubr.f32.gmra.mrb[0].mxu0 %v1210
        %v1278 = vpop.f32.mrb[0].mxu0
        %v1279 = vadd.f32 %v1207, %v1278
        %v1280 = vpop.f32.mrb[0].mxu0
        %1281 = vdwg.mxu0
        %v1282 = vmax.f32 %v1279, 0.0
        %v1283 = vld [vmem:[%s6] sm:$0xff]
        %v1284 = vld [vmem:[%s6 + $0x8] sm:$0xff]
        %v1285 = vld [vmem:[%s6 + $0x10] sm:$0xff]
        %v1286 = vld [vmem:[%s6 + $0x18] sm:$0xff]
        %v1287 = vld [vmem:[%s6 + $0x20] sm:$0xff]
        %v1288 = vld [vmem:[%s6 + $0x28] sm:$0xff]
        %v1289 = vld [vmem:[%s6 + $0x30] sm:$0xff]
        %v1290 = vld [vmem:[%s6 + $0x38] sm:$0xff]
        %v1291 = vlaneseq
        %v1292 = vshrl.u32 %v1291, 7
        %v1293 = vsub.s32 1, %v1292
        %v1294 = vrot.slane %v1164, %v1293
        %vm1295 = vcmask 523264
        %v1297 = vsel %vm1295, %v1282, 0
        %1299 = vmatprep.subr.mxu0 0.0
        %1300 = vmatpush1.msra.mxu0 %v1283
        %1301 = vmatprep.subr.mxu0 0.0
        %1302 = vmatpush1.msra.mxu0 %v1284
        %1303 = vmatprep.subr.mxu0 0.0
        %1304 = vmatpush1.msra.mxu0 %v1285
        %1305 = vmatprep.subr.mxu0 0.0
        %1306 = vmatpush1.msra.mxu0 %v1286
        %1307 = vmatprep.subr.mxu0 0.0
        %1308 = vmatpush1.msra.mxu0 %v1287
        %1309 = vmatprep.subr.mxu0 0.0
        %1310 = vmatpush1.msra.mxu0 %v1288
        %1311 = vmatprep.subr.mxu0 0.0
        %1312 = vmatpush1.msra.mxu0 %v1289
        %1313 = vmatprep.subr.mxu0 0.0
        %1314 = vmatpush1.msra.mxu0 %v1290
        %1315 = vmatprep.subr.mxu0 0.0
        %1316 = vmatpush1.msra.mxu0 0.0
        %1317 = vmatprep.subr.mxu0 0.0
        %1318 = vmatpush1.msra.mxu0 0.0
        %1319 = vmatprep.subr.mxu0 0.0
        %1320 = vmatpush1.msra.mxu0 0.0
        %1321 = vmatprep.subr.mxu0 0.0
        %1322 = vmatpush1.msra.mxu0 0.0
        %1323 = vmatprep.subr.mxu0 0.0
        %1324 = vmatpush1.msra.mxu0 0.0
        %1325 = vmatprep.subr.mxu0 0.0
        %1326 = vmatpush1.msra.mxu0 0.0
        %1327 = vmatprep.subr.mxu0 0.0
        %1328 = vmatpush1.msra.mxu0 0.0
        %1329 = vmatprep.subr.mxu0 0.0
        %1330 = vmatpush1.msra.mxu0 0.0
        %1331 = vmatprep.subr.mxu0 0.0
        %1332 = vmatpush1.msra.mxu0 0.0
        %1333 = vmatprep.subr.mxu0 0.0
        %1334 = vmatpush1.msra.mxu0 0.0
        %1335 = vmatprep.subr.mxu0 0.0
        %1336 = vmatpush1.msra.mxu0 0.0
        %1337 = vmatprep.subr.mxu0 0.0
        %1338 = vmatpush1.msra.mxu0 0.0
        %1339 = vmatprep.subr.mxu0 0.0
        %1340 = vmatpush1.msra.mxu0 0.0
        %1341 = vmatprep.subr.mxu0 0.0
        %1342 = vmatpush1.msra.mxu0 0.0
        %1343 = vmatprep.subr.mxu0 0.0
        %1344 = vmatpush1.msra.mxu0 0.0
        %1345 = vmatprep.subr.mxu0 0.0
        %1346 = vmatpush1.msra.mxu0 0.0
        %1347 = vmatprep.subr.mxu0 0.0
        %1348 = vmatpush1.msra.mxu0 0.0
        %1349 = vmatprep.subr.mxu0 0.0
        %1350 = vmatpush1.msra.mxu0 0.0
        %1351 = vmatprep.subr.mxu0 0.0
        %1352 = vmatpush1.msra.mxu0 0.0
        %1353 = vmatprep.subr.mxu0 0.0
        %1354 = vmatpush1.msra.mxu0 0.0
        %1355 = vmatprep.subr.mxu0 0.0
        %1356 = vmatpush1.msra.mxu0 0.0
        %1357 = vmatprep.subr.mxu0 0.0
        %1358 = vmatpush1.msra.mxu0 0.0
        %1359 = vmatprep.subr.mxu0 0.0
        %1360 = vmatpush1.msra.mxu0 0.0
        %1361 = vmatprep.subr.mxu0 0.0
        %1362 = vmatpush1.msra.mxu0 0.0
        %1363 = vmatprep.mubr.f32.mxu0 0.0
        %1364 = vmatmul.mubr.f32.gmra.mrb[0].mxu0 %v1297
        %v1365 = vpop.f32.mrb[0].mxu0
        %v1366 = vadd.f32 %v1294, %v1365
        %v1367 = vpop.f32.mrb[0].mxu0
        %1368 = vdwg.mxu0
        %v1369 = vadd.f32 %v1197, %v1366
        %v1370 = vsel %vm333, %v1369, 0.0
        %1371 = vadd.xlane.f32.xlu0 %v1370
        %v1372 = vpop.xlane.xlu0 %1371
        %v1373 = vmul.f32 %v1372, %v1174
        %v1374 = vmul.f32 %v1369, %v1369
        %v1375 = vsel %vm333, %v1374, 0.0
        %1376 = vadd.xlane.f32.xlu0 %v1375
        %v1377 = vpop.xlane.xlu0 %1376
        %v1378 = vmul.f32 %v1377, %v1174
        %v1379 = vmul.f32 %v1373, %v1373
        %v1380 = vsub.f32 %v1378, %v1379
        %v1381 = vmax.f32 %v1380, 0.0
        %v1382 = vsub.f32 %v1369, %v1373
        %v1383 = vadd.f32 %v1381, 1e-05
        %v1384 = vrsqrt.pop %v1383
        %v1385 = vmul.f32 %v1382, %v1384
        %v1386 = vlaneseq
        %v1387 = vshrl.u32 %v1386, 7
        %v1388 = vsub.s32 4, %v1387
        %v1389 = vrot.slane %v1164, %v1388
        %v1390 = vmul.f32 %v1385, %v1389
        %v1391 = vlaneseq
        %v1392 = vshrl.u32 %v1391, 7
        %v1393 = vsub.s32 5, %v1392
        %v1394 = vrot.slane %v1164, %v1393
        %v1395 = vadd.f32 %v1390, %v1394
        %1396 = vst.msk [vmem:[%s320] sm:$0xff] %vm333, %v1395
        %s1397 = sand.u32 %s206, 1
        %s1398 = scalar_lea.sflag [#allocation5], %s1397
        %s1399 = sand.u32 %s206, 1
        %s1400 = smul.addr %s1399, 8
        %s1401 = scalar_lea.vmem [#allocation6], %s1400
        // Predicated region
        $region57: #{tpu_custom_call.1} parent=51 // pred_check
          %p1402 = pneg %p216
        $region58: #{tpu_custom_call.1} parent=51 // pred_check_branch
          %1404 = sbr.rel (%p1402) target = $region60
        $region59: #{tpu_custom_call.1} parent=51 // pred_region
          %s1406 = ssub.s32 128, 128
          %1407 = vsyncadd %s1398, %s1406
          %s1408 = smul.addr %s25, 128
          %s1409 = scalar_lea.hbm %s8, %s1408
          %s1411 = sshll.u32 %s1401, 4
          %s1412 = int_to_ptr.vmem [resolvable:$true] %s1411
          %1414 = dma.vmem_to_hbm [thread:$0]  %s1412, 128, %s1409, %s1398
        $region60: #{tpu_custom_call.1} parent=51 // pred_fallthru
          _
      $region52: #{tpu_custom_call.1} parent=5 // pred_fallthru
        _
      %p1415 = scmp.le.s32.totalorder 2, %s20
      // Predicated region
      $region61: #{tpu_custom_call.1} parent=5 // pred_check
        %p1416 = pneg %p1415
      $region62: #{tpu_custom_call.1} parent=5 // pred_check_branch
        %1418 = sbr.rel (%p1416) target = $region64
      $region63: #{tpu_custom_call.1} parent=5 // pred_region
        %s1419 = ssub.s32 %s20, 2
        // Predicated region
        $region65: #{tpu_custom_call.1} parent=63 // pred_check
          %p1420 = pneg %p222
        $region66: #{tpu_custom_call.1} parent=63 // pred_check_branch
          %1422 = sbr.rel (%p1420) target = $region68
        $region67: #{tpu_custom_call.1} parent=63 // pred_region
          %s1423 = sand.u32 %s207, 1
          %s1424 = scalar_lea.sflag [#allocation5], %s1423
          %s1425 = sand.u32 %s207, 1
          %s1426 = smul.addr %s1425, 8
          %s1427 = scalar_lea.vmem [#allocation6], %s1426
          %1428 = dma.done %s1424, 128
        $region68: #{tpu_custom_call.1} parent=63 // pred_fallthru
          _
      $region64: #{tpu_custom_call.1} parent=5 // pred_fallthru
        _
    $region6: #{tpu_custom_call.1} parent=1 // loop_footer
      %s24 = sadd.s32 1, %s20
    $region7: #{tpu_custom_call.1} parent=1 // loop_footer_branch
      %19 = sbr.rel target = $region3
    $region8: #{tpu_custom_call.1} parent=1 // loop_exit
      _
    %1429 = vsyncpa [#allocation4], 1
    %s1430 = scalar_lea.sflag [#allocation4], 1
    %1431 = vsyncpa %s1430, 1
    %1432 = vsyncpa [#allocation5], 1
    %s1433 = scalar_lea.sflag [#allocation5], 1
    %1434 = vsyncpa %s1433, 1

</llo_original>
